<compile_context>
chip_gen: v7x
topology: tpu7x:2x2x1
jax: 0.10.0
libtpu: 0.0.40
codegen_flags: <defaults>
</compile_context>

<pallas_src>
import functools
import math

import jax
import jax.numpy as jnp
from jax import lax
from jax.experimental import pallas as pl
from jax.experimental.pallas import tpu as pltpu

DEFAULT_MATMUL_DTYPE = jnp.bfloat16   # MXU operand dtype; accumulation is always f32


def _vmem_limit_bytes():
    """Generation-aware scoped-VMEM limit (v5e/v6e: 128 MiB phys, v7x: 64 MiB)."""
    try:
        cap = pltpu.get_tpu_info().vmem_capacity_bytes
    except Exception:
        cap = 0
    if cap >= 100 * 1024 * 1024:
        return 96 * 1024 * 1024     # v5e / v6e
    return 48 * 1024 * 1024         # v7x (or unknown): stay well under 64 MiB


def _group_norm(x, gamma, beta, eps):
    """GroupNorm(num_groups=1) over all elements of one sample, two-pass, f32."""
    mean = jnp.mean(x)
    xc = x - mean
    var = jnp.mean(xc * xc)
    return xc * lax.rsqrt(var + eps) * gamma + beta


def _conv3x3(y_flat, w_ref, b_ref, pad_sc, col_sc, H, W, C, use_im2col):
    """3x3 same-padding conv of y_flat (S, C) f32 using the shared padded scratch.

    Interior of pad_sc is overwritten; the 1-wide halo border is assumed zero.
    Returns (S, Cout) f32.
    """
    S = H * W
    Cout = w_ref.shape[1]
    pad_sc[1:H + 1, 1:W + 1, :] = y_flat.reshape(H, W, C).astype(pad_sc.dtype)

    if use_im2col:
        # Small Cin: one fat (S, 9C) @ (9C, Cout) matmul (K = 9*Cin fills the MXU).
        for dy in range(3):
            for dx in range(3):
                t = dy * 3 + dx
                col_sc[:, t * C:(t + 1) * C] = (
                    pad_sc[dy:dy + H, dx:dx + W, :].reshape(S, C)
                    .astype(col_sc.dtype))
        acc = jnp.dot(col_sc[...], w_ref[...],
                      preferred_element_type=jnp.float32)
    else:
        # Large Cin: accumulate 9 shifted-window matmuls; no (S, 9C) scratch.
        acc = jnp.zeros((S, Cout), jnp.float32)
        for dy in range(3):
            for dx in range(3):
                t = dy * 3 + dx
                lhs = (pad_sc[dy:dy + H, dx:dx + W, :].reshape(S, C)
                       .astype(w_ref.dtype))
                acc = acc + jnp.dot(lhs, w_ref[t * C:(t + 1) * C, :],
                                    preferred_element_type=jnp.float32)
    return acc + b_ref[...]


# ----------------------------------------------------------------------------
# Kernel 1: fused ResNetBlock per batch element
#   GN1 + SiLU + conv1 -> GN2 + SiLU + (dropout=id) + conv2 + residual
# ----------------------------------------------------------------------------
def _resnet_kernel(*refs, H, W, C, eps, use_im2col):
    if use_im2col:
        (x_ref, w1_ref, cb1_ref, g1_ref, be1_ref,
         w2_ref, cb2_ref, g2_ref, be2_ref, out_ref, pad_sc, col_sc) = refs
    else:
        (x_ref, w1_ref, cb1_ref, g1_ref, be1_ref,
         w2_ref, cb2_ref, g2_ref, be2_ref, out_ref, pad_sc) = refs
        col_sc = None

    x = x_ref[0].astype(jnp.float32)                       # (S, C)

    # Zero only the 1-wide halo border (once); both convs overwrite the interior.
    zrow = jnp.zeros((1, W + 2, C), pad_sc.dtype)
    zcol = jnp.zeros((H + 2, 1, C), pad_sc.dtype)
    pad_sc[0:1, :, :] = zrow
    pad_sc[H + 1:H + 2, :, :] = zrow
    pad_sc[:, 0:1, :] = zcol
    pad_sc[:, W + 1:W + 2, :] = zcol

    # --- GN1 + SiLU + conv1 ---
    y1 = _group_norm(x, g1_ref[...], be1_ref[...], eps)
    y1 = y1 * jax.nn.sigmoid(y1)
    h = _conv3x3(y1, w1_ref, cb1_ref, pad_sc, col_sc, H, W, C, use_im2col)

    # --- GN2 + SiLU + (dropout = identity at inference) + conv2 + residual ---
    y2 = _group_norm(h, g2_ref[...], be2_ref[...], eps)
    y2 = y2 * jax.nn.sigmoid(y2)
    h2 = _conv3x3(y2, w2_ref, cb2_ref, pad_sc, col_sc, H, W, C, use_im2col)

    out_ref[0] = (h2 + x).astype(out_ref.dtype)


def resnet_block(xs, g1, b1, w1_hwio, c1b, g2, b2, w2_hwio, c2b, *, H, W,
                 eps=1e-5, matmul_dtype=DEFAULT_MATMUL_DTYPE):
    B, S, C = xs.shape
    assert S == H * W
    assert w1_hwio.shape == (3, 3, C, C) and w2_hwio.shape == (3, 3, C, C)
    use_im2col = C < 128

    w1 = w1_hwio.reshape(9 * C, C).astype(matmul_dtype)    # tap-major rows
    w2 = w2_hwio.reshape(9 * C, C).astype(matmul_dtype)

    scratch = [pltpu.VMEM((H + 2, W + 2, C), jnp.float32)]  # padded activations
    if use_im2col:
        scratch.append(pltpu.VMEM((S, 9 * C), matmul_dtype))  # im2col (small C only)

    # TODO(synk): at B == 1 add a spatial-tile parallel axis so v7x's 2nd TC is used;
    #             a Buffered(3) input pipeline would also help in the mem-bound regime.
    return pl.pallas_call(
        functools.partial(_resnet_kernel, H=H, W=W, C=C, eps=eps,
                          use_im2col=use_im2col),
        out_shape=jax.ShapeDtypeStruct((B, S, C), xs.dtype),
        grid=(B,),
        in_specs=[
            pl.BlockSpec((1, S, C), lambda b: (b, 0, 0)),
            pl.BlockSpec((9 * C, C), lambda b: (0, 0)),
            pl.BlockSpec((1, C), lambda b: (0, 0)),
            pl.BlockSpec((1, C), lambda b: (0, 0)),
            pl.BlockSpec((1, C), lambda b: (0, 0)),
            pl.BlockSpec((9 * C, C), lambda b: (0, 0)),
            pl.BlockSpec((1, C), lambda b: (0, 0)),
            pl.BlockSpec((1, C), lambda b: (0, 0)),
            pl.BlockSpec((1, C), lambda b: (0, 0)),
        ],
        out_specs=pl.BlockSpec((1, S, C), lambda b: (b, 0, 0)),
        scratch_shapes=scratch,
        compiler_params=pltpu.CompilerParams(
            dimension_semantics=("parallel",),
            vmem_limit_bytes=_vmem_limit_bytes()),
    )(xs, w1, c1b.reshape(1, C), g1.reshape(1, C), b1.reshape(1, C),
      w2, c2b.reshape(1, C), g2.reshape(1, C), b2.reshape(1, C))


# ----------------------------------------------------------------------------
# Kernel 2: fused GroupNorm(1, C) + multi-head self-attention + residual add.
# ----------------------------------------------------------------------------
def _gn_mha_kernel(xs_ref, win_t_ref, bin_ref, wout_t_ref, bout_ref,
                   g_ref, beta_ref, out_ref, o_sc, *, heads, eps):
    xs = xs_ref[0].astype(jnp.float32)                     # (S, E)
    S, E = xs.shape
    d = E // heads
    md = win_t_ref.dtype                                   # MXU operand dtype

    xn = _group_norm(xs, g_ref[...], beta_ref[...], eps)

    # Fused QKV projection: one (S, E) @ (E, 3E) matmul.
    qkv = jnp.dot(xn.astype(md), win_t_ref[...],
                  preferred_element_type=jnp.float32) + bin_ref[...]
    q = (qkv[:, 0:E] * (1.0 / math.sqrt(d))).astype(md)    # fold 1/sqrt(d) once
    kT = qkv[:, E:2 * E].T.astype(md)                      # single (S,E)->(E,S) transpose
    v = qkv[:, 2 * E:3 * E].astype(md)

    # TODO(synk): group heads / add flash-style KV-query tiling for d < 128 or
    #             S >~ 2K (see module header).
    for h in range(heads):
        lo = h * d
        s = jnp.dot(q[:, lo:lo + d], kT[lo:lo + d, :],
                    preferred_element_type=jnp.float32)    # (S, S)
        s = s - jnp.max(s, axis=-1, keepdims=True)
        p = jnp.exp(s)
        p = p * pl.reciprocal(jnp.sum(p, axis=-1, keepdims=True), approx=True)
        oh = jnp.dot(p.astype(md), v[:, lo:lo + d],
                     preferred_element_type=jnp.float32)   # (S, d)
        o_sc[:, lo:lo + d] = oh.astype(o_sc.dtype)         # stage, no running y

    # One K=E out-projection over all heads.
    y = jnp.dot(o_sc[...], wout_t_ref[...],
                preferred_element_type=jnp.float32) + bout_ref[...]

    # Residual add reuses this kernel's own input block.
    out_ref[0] = (xs + y).astype(out_ref.dtype)


def gn_mha_self_attention(xs, gamma, beta, in_w, in_b, out_w, out_b, heads, *,
                          eps=1e-5, matmul_dtype=DEFAULT_MATMUL_DTYPE):
    B, S, E = xs.shape
    assert E % heads == 0
    w_in_t = jnp.transpose(in_w).astype(matmul_dtype)      # (E, 3E)
    w_out_t = jnp.transpose(out_w).astype(matmul_dtype)    # (E, E)
    return pl.pallas_call(
        functools.partial(_gn_mha_kernel, heads=heads, eps=eps),
        out_shape=jax.ShapeDtypeStruct((B, S, E), xs.dtype),
        grid=(B,),
        in_specs=[
            pl.BlockSpec((1, S, E), lambda b: (b, 0, 0)),
            pl.BlockSpec((E, 3 * E), lambda b: (0, 0)),
            pl.BlockSpec((1, 3 * E), lambda b: (0, 0)),
            pl.BlockSpec((E, E), lambda b: (0, 0)),
            pl.BlockSpec((1, E), lambda b: (0, 0)),
            pl.BlockSpec((1, E), lambda b: (0, 0)),
            pl.BlockSpec((1, E), lambda b: (0, 0)),
        ],
        out_specs=pl.BlockSpec((1, S, E), lambda b: (b, 0, 0)),
        scratch_shapes=[pltpu.VMEM((S, E), matmul_dtype)],   # per-head output staging
        compiler_params=pltpu.CompilerParams(
            dimension_semantics=("parallel",),
            vmem_limit_bytes=_vmem_limit_bytes()),
    )(xs, w_in_t, in_b.reshape(1, 3 * E), w_out_t, out_b.reshape(1, E),
      gamma.reshape(1, E), beta.reshape(1, E))


# ----------------------------------------------------------------------------
# Full AttentionBlock forward: one fused ResNet pallas_call + one MHA pallas_call.
# ----------------------------------------------------------------------------
def attention_block_forward(x_nchw, params, heads, *,
                            matmul_dtype=DEFAULT_MATMUL_DTYPE):
    B, C, H, W = x_nchw.shape
    # NCHW -> (B, S, C): identical flat layout to NHWC, so the in-kernel
    # (S, C) -> (H, W, C) reshape for conv padding is a pure view.
    xs = jnp.transpose(x_nchw.reshape(B, C, H * W), (0, 2, 1))

    x_rn = resnet_block(xs,
                        params["rn_g1"], params["rn_b1"],
                        params["conv1_w"], params["conv1_b"],
                        params["rn_g2"], params["rn_b2"],
                        params["conv2_w"], params["conv2_b"],
                        H=H, W=W, matmul_dtype=matmul_dtype)

    out = gn_mha_self_attention(x_rn, params["sa_g"], params["sa_b"],
                                params["in_w"], params["in_b"],
                                params["out_w"], params["out_b"], heads,
                                matmul_dtype=matmul_dtype)
    return jnp.transpose(out, (0, 2, 1)).reshape(B, C, H, W)   # back to NCHW


# ----------------------------------------------------------------------------
# Pure-JAX reference (f32) for correctness check.
# ----------------------------------------------------------------------------
def reference_forward(x_nchw, params, heads):
    x = jnp.transpose(x_nchw, (0, 2, 3, 1))

    def gn(x4, g, b, silu):
        mean = x4.mean(axis=(1, 2, 3), keepdims=True)
        var = ((x4 - mean) ** 2).mean(axis=(1, 2, 3), keepdims=True)
        y = (x4 - mean) / jnp.sqrt(var + 1e-5) * g + b
        return y * jax.nn.sigmoid(y) if silu else y

    def conv(x4, w, b):
        y = lax.conv_general_dilated(
            x4, w, (1, 1), "SAME",
            dimension_numbers=("NHWC", "HWIO", "NHWC"))
        return y + b

    residual = x
    h = gn(x, params["rn_g1"], params["rn_b1"], True)
    h = conv(h, params["conv1_w"], params["conv1_b"])
    h = gn(h, params["rn_g2"], params["rn_b2"], True)
    h = conv(h, params["conv2_w"], params["conv2_b"])
    x_rn = h + residual

    xn = gn(x_rn, params["sa_g"], params["sa_b"], False)
    B, H, W, C = x_rn.shape
    S, E = H * W, C
    d = E // heads
    xq = xn.reshape(B, S, E)
    wq, wk, wv = jnp.split(params["in_w"], 3, axis=0)
    bq, bk, bv = jnp.split(params["in_b"], 3)
    q = (xq @ wq.T + bq).reshape(B, S, heads, d).transpose(0, 2, 1, 3)
    k = (xq @ wk.T + bk).reshape(B, S, heads, d).transpose(0, 2, 1, 3)
    v = (xq @ wv.T + bv).reshape(B, S, heads, d).transpose(0, 2, 1, 3)
    s = jnp.einsum("bhqd,bhkd->bhqk", q, k) / math.sqrt(d)
    p = jax.nn.softmax(s, axis=-1)
    o = jnp.einsum("bhqk,bhkd->bhqd", p, v).transpose(0, 2, 1, 3).reshape(B, S, E)
    y = o @ params["out_w"].T + params["out_b"]
    out = x_rn + y.reshape(B, H, W, C)
    return jnp.transpose(out, (0, 3, 1, 2))


# ----------------------------------------------------------------------------
# Deterministic parameter init (synthetic; shapes match the nn.Module).
# Conv weights stored HWIO.
# ----------------------------------------------------------------------------
def init_params(key, dim):
    ks = jax.random.split(key, 12)
    n = lambda k, shape, s=0.1: s * jax.random.normal(k, shape, jnp.float32)
    return {
        "rn_g1": 1.0 + n(ks[0], (dim,)),
        "rn_b1": n(ks[1], (dim,)),
        "conv1_w": n(ks[2], (3, 3, dim, dim)),
        "conv1_b": n(ks[3], (dim,)),
        "rn_g2": 1.0 + n(ks[4], (dim,)),
        "rn_b2": n(ks[5], (dim,)),
        "conv2_w": n(ks[6], (3, 3, dim, dim)),
        "conv2_b": n(ks[7], (dim,)),
        "sa_g": 1.0 + n(ks[8], (dim,)),
        "sa_b": n(ks[9], (dim,)),
        "in_w": n(ks[10], (3 * dim, dim)),
        "in_b": jnp.zeros((3 * dim,), jnp.float32),
        "out_w": n(ks[11], (dim, dim)),
        "out_b": jnp.zeros((dim,), jnp.float32),
    }


if __name__ == "__main__":
    key = jax.random.PRNGKey(0)
    B, C, H, W = 2, 16, 8, 8        # dim=16, heads=4 -> head_dim=4
    heads = 4
    kx, kp = jax.random.split(key)
    x = jax.random.normal(kx, (B, C, H, W), jnp.float32)
    params = init_params(kp, C)

    ref = reference_forward(x, params, heads)

    # Default bf16-MXU path (f32 accumulation / statistics): bf16-level tolerance.
    out = attention_block_forward(x, params, heads)
    out = jax.block_until_ready(out)
    assert out.shape == (B, C, H, W)
    assert jnp.allclose(out, ref, atol=5e-2, rtol=5e-2), (
        float(jnp.max(jnp.abs(out - ref))))

    # f32-MXU path: verifies the kernel algorithm at tight tolerance.
    out32 = jax.block_until_ready(
        attention_block_forward(x, params, heads, matmul_dtype=jnp.float32))
    assert jnp.allclose(out32, ref, atol=5e-3, rtol=5e-3), (
        float(jnp.max(jnp.abs(out32 - ref))))

    print("KERNEL_OK")
</pallas_src>

<mosaic_0001>
module attributes {stable_mosaic.version = 11 : i64} {
  func.func @_resnet_kernel(%arg0: i32, %arg1: memref<1x64x16xf32, #tpu.memory_space<vmem>>, %arg2: memref<144x16xbf16, #tpu.memory_space<vmem>>, %arg3: memref<1x16xf32, #tpu.memory_space<vmem>>, %arg4: memref<1x16xf32, #tpu.memory_space<vmem>>, %arg5: memref<1x16xf32, #tpu.memory_space<vmem>>, %arg6: memref<144x16xbf16, #tpu.memory_space<vmem>>, %arg7: memref<1x16xf32, #tpu.memory_space<vmem>>, %arg8: memref<1x16xf32, #tpu.memory_space<vmem>>, %arg9: memref<1x16xf32, #tpu.memory_space<vmem>>, %arg10: memref<1x64x16xf32, #tpu.memory_space<vmem>>, %arg11: memref<10x10x16xf32, #tpu.memory_space<vmem>>, %arg12: memref<64x144xbf16, #tpu.memory_space<vmem>>) attributes {dimension_semantics = [#tpu.dimension_semantics<parallel>], iteration_bounds = array<i64: 2>, scalar_prefetch = 0 : i64, scratch_operands = 2 : i64, tpu.core_type = #tpu.core_type<tc>, window_params = [{transform_indices = @transform_0, window_bounds = array<i64: 1, 64, 16>}, {pipeline_mode = #tpu.pipeline_mode<synchronous>, transform_indices = @transform_1, window_bounds = array<i64: 144, 16>}, {pipeline_mode = #tpu.pipeline_mode<synchronous>, transform_indices = @transform_2, window_bounds = array<i64: 1, 16>}, {pipeline_mode = #tpu.pipeline_mode<synchronous>, transform_indices = @transform_3, window_bounds = array<i64: 1, 16>}, {pipeline_mode = #tpu.pipeline_mode<synchronous>, transform_indices = @transform_4, window_bounds = array<i64: 1, 16>}, {pipeline_mode = #tpu.pipeline_mode<synchronous>, transform_indices = @transform_5, window_bounds = array<i64: 144, 16>}, {pipeline_mode = #tpu.pipeline_mode<synchronous>, transform_indices = @transform_6, window_bounds = array<i64: 1, 16>}, {pipeline_mode = #tpu.pipeline_mode<synchronous>, transform_indices = @transform_7, window_bounds = array<i64: 1, 16>}, {pipeline_mode = #tpu.pipeline_mode<synchronous>, transform_indices = @transform_8, window_bounds = array<i64: 1, 16>}, {transform_indices = @transform_9, window_bounds = array<i64: 1, 64, 16>}]} {
    %c0 = arith.constant 0 : index
    %c0_0 = arith.constant 0 : index
    %c0_1 = arith.constant 0 : index
    %0 = vector.load %arg1[%c0, %c0_0, %c0_1] : memref<1x64x16xf32, #tpu.memory_space<vmem>>, vector<1x64x16xf32>
    %1 = vector.shape_cast %0 : vector<1x64x16xf32> to vector<64x16xf32>
    %cst = arith.constant 0.000000e+00 : f32
    %2 = vector.broadcast %cst : f32 to vector<1x10x16xf32>
    %cst_2 = arith.constant 0.000000e+00 : f32
    %3 = vector.broadcast %cst_2 : f32 to vector<10x1x16xf32>
    %c0_3 = arith.constant 0 : index
    %c0_4 = arith.constant 0 : index
    %c0_5 = arith.constant 0 : index
    %4 = vector.load %arg11[%c0_3, %c0_4, %c0_5] : memref<10x10x16xf32, #tpu.memory_space<vmem>>, vector<1x10x16xf32>
    tpu.vector_store %arg11[%c0_3, %c0_4, %c0_5], %2 {strides = array<i32>} : memref<10x10x16xf32, #tpu.memory_space<vmem>>, vector<1x10x16xf32>,
    %c9 = arith.constant 9 : index
    %c0_6 = arith.constant 0 : index
    %c0_7 = arith.constant 0 : index
    %5 = vector.load %arg11[%c9, %c0_6, %c0_7] : memref<10x10x16xf32, #tpu.memory_space<vmem>>, vector<1x10x16xf32>
    tpu.vector_store %arg11[%c9, %c0_6, %c0_7], %2 {strides = array<i32>} : memref<10x10x16xf32, #tpu.memory_space<vmem>>, vector<1x10x16xf32>,
    %c0_8 = arith.constant 0 : index
    %c0_9 = arith.constant 0 : index
    %c0_10 = arith.constant 0 : index
    %6 = vector.load %arg11[%c0_8, %c0_9, %c0_10] : memref<10x10x16xf32, #tpu.memory_space<vmem>>, vector<10x1x16xf32>
    tpu.vector_store %arg11[%c0_8, %c0_9, %c0_10], %3 {strides = array<i32>} : memref<10x10x16xf32, #tpu.memory_space<vmem>>, vector<10x1x16xf32>,
    %c0_11 = arith.constant 0 : index
    %c9_12 = arith.constant 9 : index
    %c0_13 = arith.constant 0 : index
    %7 = vector.load %arg11[%c0_11, %c9_12, %c0_13] : memref<10x10x16xf32, #tpu.memory_space<vmem>>, vector<10x1x16xf32>
    tpu.vector_store %arg11[%c0_11, %c9_12, %c0_13], %3 {strides = array<i32>} : memref<10x10x16xf32, #tpu.memory_space<vmem>>, vector<10x1x16xf32>,
    %c0_14 = arith.constant 0 : index
    %c0_15 = arith.constant 0 : index
    %8 = vector.load %arg4[%c0_14, %c0_15] : memref<1x16xf32, #tpu.memory_space<vmem>>, vector<1x16xf32>
    %c0_16 = arith.constant 0 : index
    %c0_17 = arith.constant 0 : index
    %9 = vector.load %arg5[%c0_16, %c0_17] : memref<1x16xf32, #tpu.memory_space<vmem>>, vector<1x16xf32>
    %10 = vector.shape_cast %1 : vector<64x16xf32> to vector<1x64x16xf32>
    %cst_18 = arith.constant dense<0.000000e+00> : vector<1xf32>
    %11 = vector.multi_reduction <add>, %10, %cst_18 [1, 2] : vector<1x64x16xf32> to vector<1xf32>
    %12 = vector.shape_cast %11 : vector<1xf32> to vector<1x1x1xf32>
    %13 = vector.extract %12[0, 0, 0] : f32 from vector<1x1x1xf32>
    %cst_19 = arith.constant 1.024000e+03 : f32
    %14 = arith.divf %13, %cst_19 : f32
    %15 = vector.broadcast %14 : f32 to vector<64x16xf32>
    %16 = arith.subf %1, %15 : vector<64x16xf32>
    %17 = arith.mulf %16, %16 : vector<64x16xf32>
    %18 = vector.shape_cast %17 : vector<64x16xf32> to vector<1x64x16xf32>
    %cst_20 = arith.constant dense<0.000000e+00> : vector<1xf32>
    %19 = vector.multi_reduction <add>, %18, %cst_20 [1, 2] : vector<1x64x16xf32> to vector<1xf32>
    %20 = vector.shape_cast %19 : vector<1xf32> to vector<1x1x1xf32>
    %21 = vector.extract %20[0, 0, 0] : f32 from vector<1x1x1xf32>
    %cst_21 = arith.constant 1.024000e+03 : f32
    %22 = arith.divf %21, %cst_21 : f32
    %cst_22 = arith.constant 9.99999974E-6 : f32
    %23 = arith.addf %22, %cst_22 : f32
    %24 = math.rsqrt %23 : f32
    %25 = vector.broadcast %24 : f32 to vector<64x16xf32>
    %26 = arith.mulf %16, %25 : vector<64x16xf32>
    %27 = vector.broadcast %8 : vector<1x16xf32> to vector<64x16xf32>
    %28 = arith.mulf %26, %27 : vector<64x16xf32>
    %29 = vector.broadcast %9 : vector<1x16xf32> to vector<64x16xf32>
    %30 = arith.addf %28, %29 : vector<64x16xf32>
    %31 = arith.negf %30 : vector<64x16xf32>
    %32 = math.exp %31 : vector<64x16xf32>
    %cst_23 = arith.constant 1.000000e+00 : f32
    %33 = vector.broadcast %cst_23 : f32 to vector<64x16xf32>
    %34 = arith.addf %33, %32 : vector<64x16xf32>
    %35 = arith.divf %33, %34 : vector<64x16xf32>
    %36 = arith.mulf %30, %35 : vector<64x16xf32>
    %37 = vector.shape_cast %36 : vector<64x16xf32> to vector<8x8x16xf32>
    %c1 = arith.constant 1 : index
    %c1_24 = arith.constant 1 : index
    %c0_25 = arith.constant 0 : index
    %38 = vector.load %arg11[%c1, %c1_24, %c0_25] : memref<10x10x16xf32, #tpu.memory_space<vmem>>, vector<8x8x16xf32>
    tpu.vector_store %arg11[%c1, %c1_24, %c0_25], %37 {strides = array<i32>} : memref<10x10x16xf32, #tpu.memory_space<vmem>>, vector<8x8x16xf32>,
    %c0_26 = arith.constant 0 : index
    %c0_27 = arith.constant 0 : index
    %c0_28 = arith.constant 0 : index
    %39 = vector.load %arg11[%c0_26, %c0_27, %c0_28] : memref<10x10x16xf32, #tpu.memory_space<vmem>>, vector<8x8x16xf32>
    %40 = vector.shape_cast %39 : vector<8x8x16xf32> to vector<64x16xf32>
    %41 = arith.truncf %40 : vector<64x16xf32> to vector<64x16xbf16>
    %c0_29 = arith.constant 0 : index
    %c0_30 = arith.constant 0 : index
    %42 = vector.load %arg12[%c0_29, %c0_30] : memref<64x144xbf16, #tpu.memory_space<vmem>>, vector<64x16xbf16>
    tpu.vector_store %arg12[%c0_29, %c0_30], %41 {strides = array<i32>} : memref<64x144xbf16, #tpu.memory_space<vmem>>, vector<64x16xbf16>,
    %c0_31 = arith.constant 0 : index
    %c1_32 = arith.constant 1 : index
    %c0_33 = arith.constant 0 : index
    %43 = vector.load %arg11[%c0_31, %c1_32, %c0_33] : memref<10x10x16xf32, #tpu.memory_space<vmem>>, vector<8x8x16xf32>
    %44 = vector.shape_cast %43 : vector<8x8x16xf32> to vector<64x16xf32>
    %45 = arith.truncf %44 : vector<64x16xf32> to vector<64x16xbf16>
    %c0_34 = arith.constant 0 : index
    %c16 = arith.constant 16 : index
    %46 = vector.load %arg12[%c0_34, %c16] : memref<64x144xbf16, #tpu.memory_space<vmem>>, vector<64x16xbf16>
    tpu.vector_store %arg12[%c0_34, %c16], %45 {strides = array<i32>} : memref<64x144xbf16, #tpu.memory_space<vmem>>, vector<64x16xbf16>,
    %c0_35 = arith.constant 0 : index
    %c2 = arith.constant 2 : index
    %c0_36 = arith.constant 0 : index
    %47 = vector.load %arg11[%c0_35, %c2, %c0_36] : memref<10x10x16xf32, #tpu.memory_space<vmem>>, vector<8x8x16xf32>
    %48 = vector.shape_cast %47 : vector<8x8x16xf32> to vector<64x16xf32>
    %49 = arith.truncf %48 : vector<64x16xf32> to vector<64x16xbf16>
    %c0_37 = arith.constant 0 : index
    %c32 = arith.constant 32 : index
    %50 = vector.load %arg12[%c0_37, %c32] : memref<64x144xbf16, #tpu.memory_space<vmem>>, vector<64x16xbf16>
    tpu.vector_store %arg12[%c0_37, %c32], %49 {strides = array<i32>} : memref<64x144xbf16, #tpu.memory_space<vmem>>, vector<64x16xbf16>,
    %c1_38 = arith.constant 1 : index
    %c0_39 = arith.constant 0 : index
    %c0_40 = arith.constant 0 : index
    %51 = vector.load %arg11[%c1_38, %c0_39, %c0_40] : memref<10x10x16xf32, #tpu.memory_space<vmem>>, vector<8x8x16xf32>
    %52 = vector.shape_cast %51 : vector<8x8x16xf32> to vector<64x16xf32>
    %53 = arith.truncf %52 : vector<64x16xf32> to vector<64x16xbf16>
    %c0_41 = arith.constant 0 : index
    %c48 = arith.constant 48 : index
    %54 = vector.load %arg12[%c0_41, %c48] : memref<64x144xbf16, #tpu.memory_space<vmem>>, vector<64x16xbf16>
    tpu.vector_store %arg12[%c0_41, %c48], %53 {strides = array<i32>} : memref<64x144xbf16, #tpu.memory_space<vmem>>, vector<64x16xbf16>,
    %c1_42 = arith.constant 1 : index
    %c1_43 = arith.constant 1 : index
    %c0_44 = arith.constant 0 : index
    %55 = vector.load %arg11[%c1_42, %c1_43, %c0_44] : memref<10x10x16xf32, #tpu.memory_space<vmem>>, vector<8x8x16xf32>
    %56 = vector.shape_cast %55 : vector<8x8x16xf32> to vector<64x16xf32>
    %57 = arith.truncf %56 : vector<64x16xf32> to vector<64x16xbf16>
    %c0_45 = arith.constant 0 : index
    %c64 = arith.constant 64 : index
    %58 = vector.load %arg12[%c0_45, %c64] : memref<64x144xbf16, #tpu.memory_space<vmem>>, vector<64x16xbf16>
    tpu.vector_store %arg12[%c0_45, %c64], %57 {strides = array<i32>} : memref<64x144xbf16, #tpu.memory_space<vmem>>, vector<64x16xbf16>,
    %c1_46 = arith.constant 1 : index
    %c2_47 = arith.constant 2 : index
    %c0_48 = arith.constant 0 : index
    %59 = vector.load %arg11[%c1_46, %c2_47, %c0_48] : memref<10x10x16xf32, #tpu.memory_space<vmem>>, vector<8x8x16xf32>
    %60 = vector.shape_cast %59 : vector<8x8x16xf32> to vector<64x16xf32>
    %61 = arith.truncf %60 : vector<64x16xf32> to vector<64x16xbf16>
    %c0_49 = arith.constant 0 : index
    %c80 = arith.constant 80 : index
    %62 = vector.load %arg12[%c0_49, %c80] : memref<64x144xbf16, #tpu.memory_space<vmem>>, vector<64x16xbf16>
    tpu.vector_store %arg12[%c0_49, %c80], %61 {strides = array<i32>} : memref<64x144xbf16, #tpu.memory_space<vmem>>, vector<64x16xbf16>,
    %c2_50 = arith.constant 2 : index
    %c0_51 = arith.constant 0 : index
    %c0_52 = arith.constant 0 : index
    %63 = vector.load %arg11[%c2_50, %c0_51, %c0_52] : memref<10x10x16xf32, #tpu.memory_space<vmem>>, vector<8x8x16xf32>
    %64 = vector.shape_cast %63 : vector<8x8x16xf32> to vector<64x16xf32>
    %65 = arith.truncf %64 : vector<64x16xf32> to vector<64x16xbf16>
    %c0_53 = arith.constant 0 : index
    %c96 = arith.constant 96 : index
    %66 = vector.load %arg12[%c0_53, %c96] : memref<64x144xbf16, #tpu.memory_space<vmem>>, vector<64x16xbf16>
    tpu.vector_store %arg12[%c0_53, %c96], %65 {strides = array<i32>} : memref<64x144xbf16, #tpu.memory_space<vmem>>, vector<64x16xbf16>,
    %c2_54 = arith.constant 2 : index
    %c1_55 = arith.constant 1 : index
    %c0_56 = arith.constant 0 : index
    %67 = vector.load %arg11[%c2_54, %c1_55, %c0_56] : memref<10x10x16xf32, #tpu.memory_space<vmem>>, vector<8x8x16xf32>
    %68 = vector.shape_cast %67 : vector<8x8x16xf32> to vector<64x16xf32>
    %69 = arith.truncf %68 : vector<64x16xf32> to vector<64x16xbf16>
    %c0_57 = arith.constant 0 : index
    %c112 = arith.constant 112 : index
    %70 = vector.load %arg12[%c0_57, %c112] : memref<64x144xbf16, #tpu.memory_space<vmem>>, vector<64x16xbf16>
    tpu.vector_store %arg12[%c0_57, %c112], %69 {strides = array<i32>} : memref<64x144xbf16, #tpu.memory_space<vmem>>, vector<64x16xbf16>,
    %c2_58 = arith.constant 2 : index
    %c2_59 = arith.constant 2 : index
    %c0_60 = arith.constant 0 : index
    %71 = vector.load %arg11[%c2_58, %c2_59, %c0_60] : memref<10x10x16xf32, #tpu.memory_space<vmem>>, vector<8x8x16xf32>
    %72 = vector.shape_cast %71 : vector<8x8x16xf32> to vector<64x16xf32>
    %73 = arith.truncf %72 : vector<64x16xf32> to vector<64x16xbf16>
    %c0_61 = arith.constant 0 : index
    %c128 = arith.constant 128 : index
    %74 = vector.load %arg12[%c0_61, %c128] : memref<64x144xbf16, #tpu.memory_space<vmem>>, vector<64x16xbf16>
    tpu.vector_store %arg12[%c0_61, %c128], %73 {strides = array<i32>} : memref<64x144xbf16, #tpu.memory_space<vmem>>, vector<64x16xbf16>,
    %c0_62 = arith.constant 0 : index
    %c0_63 = arith.constant 0 : index
    %75 = vector.load %arg12[%c0_62, %c0_63] : memref<64x144xbf16, #tpu.memory_space<vmem>>, vector<64x144xbf16>
    %c0_64 = arith.constant 0 : index
    %c0_65 = arith.constant 0 : index
    %76 = vector.load %arg2[%c0_64, %c0_65] : memref<144x16xbf16, #tpu.memory_space<vmem>>, vector<144x16xbf16>
    %cst_66 = arith.constant dense<0.000000e+00> : vector<64x16xf32>
    %77 = tpu.matmul %75, %76, %cst_66 {dimension_numbers = #tpu.dot_dimension_numbers<[1], [0], [0], [1], [0, 0, 1, 1], [], []>} : vector<64x144xbf16>, vector<144x16xbf16>, vector<64x16xf32> -> vector<64x16xf32>
    %c0_67 = arith.constant 0 : index
    %c0_68 = arith.constant 0 : index
    %78 = vector.load %arg3[%c0_67, %c0_68] : memref<1x16xf32, #tpu.memory_space<vmem>>, vector<1x16xf32>
    %79 = vector.broadcast %78 : vector<1x16xf32> to vector<64x16xf32>
    %80 = arith.addf %77, %79 : vector<64x16xf32>
    %c0_69 = arith.constant 0 : index
    %c0_70 = arith.constant 0 : index
    %81 = vector.load %arg8[%c0_69, %c0_70] : memref<1x16xf32, #tpu.memory_space<vmem>>, vector<1x16xf32>
    %c0_71 = arith.constant 0 : index
    %c0_72 = arith.constant 0 : index
    %82 = vector.load %arg9[%c0_71, %c0_72] : memref<1x16xf32, #tpu.memory_space<vmem>>, vector<1x16xf32>
    %83 = vector.shape_cast %80 : vector<64x16xf32> to vector<1x64x16xf32>
    %cst_73 = arith.constant dense<0.000000e+00> : vector<1xf32>
    %84 = vector.multi_reduction <add>, %83, %cst_73 [1, 2] : vector<1x64x16xf32> to vector<1xf32>
    %85 = vector.shape_cast %84 : vector<1xf32> to vector<1x1x1xf32>
    %86 = vector.extract %85[0, 0, 0] : f32 from vector<1x1x1xf32>
    %cst_74 = arith.constant 1.024000e+03 : f32
    %87 = arith.divf %86, %cst_74 : f32
    %88 = vector.broadcast %87 : f32 to vector<64x16xf32>
    %89 = arith.subf %80, %88 : vector<64x16xf32>
    %90 = arith.mulf %89, %89 : vector<64x16xf32>
    %91 = vector.shape_cast %90 : vector<64x16xf32> to vector<1x64x16xf32>
    %cst_75 = arith.constant dense<0.000000e+00> : vector<1xf32>
    %92 = vector.multi_reduction <add>, %91, %cst_75 [1, 2] : vector<1x64x16xf32> to vector<1xf32>
    %93 = vector.shape_cast %92 : vector<1xf32> to vector<1x1x1xf32>
    %94 = vector.extract %93[0, 0, 0] : f32 from vector<1x1x1xf32>
    %cst_76 = arith.constant 1.024000e+03 : f32
    %95 = arith.divf %94, %cst_76 : f32
    %cst_77 = arith.constant 9.99999974E-6 : f32
    %96 = arith.addf %95, %cst_77 : f32
    %97 = math.rsqrt %96 : f32
    %98 = vector.broadcast %97 : f32 to vector<64x16xf32>
    %99 = arith.mulf %89, %98 : vector<64x16xf32>
    %100 = vector.broadcast %81 : vector<1x16xf32> to vector<64x16xf32>
    %101 = arith.mulf %99, %100 : vector<64x16xf32>
    %102 = vector.broadcast %82 : vector<1x16xf32> to vector<64x16xf32>
    %103 = arith.addf %101, %102 : vector<64x16xf32>
    %104 = arith.negf %103 : vector<64x16xf32>
    %105 = math.exp %104 : vector<64x16xf32>
    %cst_78 = arith.constant 1.000000e+00 : f32
    %106 = vector.broadcast %cst_78 : f32 to vector<64x16xf32>
    %107 = arith.addf %106, %105 : vector<64x16xf32>
    %108 = arith.divf %106, %107 : vector<64x16xf32>
    %109 = arith.mulf %103, %108 : vector<64x16xf32>
    %110 = vector.shape_cast %109 : vector<64x16xf32> to vector<8x8x16xf32>
    %c1_79 = arith.constant 1 : index
    %c1_80 = arith.constant 1 : index
    %c0_81 = arith.constant 0 : index
    %111 = vector.load %arg11[%c1_79, %c1_80, %c0_81] : memref<10x10x16xf32, #tpu.memory_space<vmem>>, vector<8x8x16xf32>
    tpu.vector_store %arg11[%c1_79, %c1_80, %c0_81], %110 {strides = array<i32>} : memref<10x10x16xf32, #tpu.memory_space<vmem>>, vector<8x8x16xf32>,
    %c0_82 = arith.constant 0 : index
    %c0_83 = arith.constant 0 : index
    %c0_84 = arith.constant 0 : index
    %112 = vector.load %arg11[%c0_82, %c0_83, %c0_84] : memref<10x10x16xf32, #tpu.memory_space<vmem>>, vector<8x8x16xf32>
    %113 = vector.shape_cast %112 : vector<8x8x16xf32> to vector<64x16xf32>
    %114 = arith.truncf %113 : vector<64x16xf32> to vector<64x16xbf16>
    %c0_85 = arith.constant 0 : index
    %c0_86 = arith.constant 0 : index
    %115 = vector.load %arg12[%c0_85, %c0_86] : memref<64x144xbf16, #tpu.memory_space<vmem>>, vector<64x16xbf16>
    tpu.vector_store %arg12[%c0_85, %c0_86], %114 {strides = array<i32>} : memref<64x144xbf16, #tpu.memory_space<vmem>>, vector<64x16xbf16>,
    %c0_87 = arith.constant 0 : index
    %c1_88 = arith.constant 1 : index
    %c0_89 = arith.constant 0 : index
    %116 = vector.load %arg11[%c0_87, %c1_88, %c0_89] : memref<10x10x16xf32, #tpu.memory_space<vmem>>, vector<8x8x16xf32>
    %117 = vector.shape_cast %116 : vector<8x8x16xf32> to vector<64x16xf32>
    %118 = arith.truncf %117 : vector<64x16xf32> to vector<64x16xbf16>
    %c0_90 = arith.constant 0 : index
    %c16_91 = arith.constant 16 : index
    %119 = vector.load %arg12[%c0_90, %c16_91] : memref<64x144xbf16, #tpu.memory_space<vmem>>, vector<64x16xbf16>
    tpu.vector_store %arg12[%c0_90, %c16_91], %118 {strides = array<i32>} : memref<64x144xbf16, #tpu.memory_space<vmem>>, vector<64x16xbf16>,
    %c0_92 = arith.constant 0 : index
    %c2_93 = arith.constant 2 : index
    %c0_94 = arith.constant 0 : index
    %120 = vector.load %arg11[%c0_92, %c2_93, %c0_94] : memref<10x10x16xf32, #tpu.memory_space<vmem>>, vector<8x8x16xf32>
    %121 = vector.shape_cast %120 : vector<8x8x16xf32> to vector<64x16xf32>
    %122 = arith.truncf %121 : vector<64x16xf32> to vector<64x16xbf16>
    %c0_95 = arith.constant 0 : index
    %c32_96 = arith.constant 32 : index
    %123 = vector.load %arg12[%c0_95, %c32_96] : memref<64x144xbf16, #tpu.memory_space<vmem>>, vector<64x16xbf16>
    tpu.vector_store %arg12[%c0_95, %c32_96], %122 {strides = array<i32>} : memref<64x144xbf16, #tpu.memory_space<vmem>>, vector<64x16xbf16>,
    %c1_97 = arith.constant 1 : index
    %c0_98 = arith.constant 0 : index
    %c0_99 = arith.constant 0 : index
    %124 = vector.load %arg11[%c1_97, %c0_98, %c0_99] : memref<10x10x16xf32, #tpu.memory_space<vmem>>, vector<8x8x16xf32>
    %125 = vector.shape_cast %124 : vector<8x8x16xf32> to vector<64x16xf32>
    %126 = arith.truncf %125 : vector<64x16xf32> to vector<64x16xbf16>
    %c0_100 = arith.constant 0 : index
    %c48_101 = arith.constant 48 : index
    %127 = vector.load %arg12[%c0_100, %c48_101] : memref<64x144xbf16, #tpu.memory_space<vmem>>, vector<64x16xbf16>
    tpu.vector_store %arg12[%c0_100, %c48_101], %126 {strides = array<i32>} : memref<64x144xbf16, #tpu.memory_space<vmem>>, vector<64x16xbf16>,
    %c1_102 = arith.constant 1 : index
    %c1_103 = arith.constant 1 : index
    %c0_104 = arith.constant 0 : index
    %128 = vector.load %arg11[%c1_102, %c1_103, %c0_104] : memref<10x10x16xf32, #tpu.memory_space<vmem>>, vector<8x8x16xf32>
    %129 = vector.shape_cast %128 : vector<8x8x16xf32> to vector<64x16xf32>
    %130 = arith.truncf %129 : vector<64x16xf32> to vector<64x16xbf16>
    %c0_105 = arith.constant 0 : index
    %c64_106 = arith.constant 64 : index
    %131 = vector.load %arg12[%c0_105, %c64_106] : memref<64x144xbf16, #tpu.memory_space<vmem>>, vector<64x16xbf16>
    tpu.vector_store %arg12[%c0_105, %c64_106], %130 {strides = array<i32>} : memref<64x144xbf16, #tpu.memory_space<vmem>>, vector<64x16xbf16>,
    %c1_107 = arith.constant 1 : index
    %c2_108 = arith.constant 2 : index
    %c0_109 = arith.constant 0 : index
    %132 = vector.load %arg11[%c1_107, %c2_108, %c0_109] : memref<10x10x16xf32, #tpu.memory_space<vmem>>, vector<8x8x16xf32>
    %133 = vector.shape_cast %132 : vector<8x8x16xf32> to vector<64x16xf32>
    %134 = arith.truncf %133 : vector<64x16xf32> to vector<64x16xbf16>
    %c0_110 = arith.constant 0 : index
    %c80_111 = arith.constant 80 : index
    %135 = vector.load %arg12[%c0_110, %c80_111] : memref<64x144xbf16, #tpu.memory_space<vmem>>, vector<64x16xbf16>
    tpu.vector_store %arg12[%c0_110, %c80_111], %134 {strides = array<i32>} : memref<64x144xbf16, #tpu.memory_space<vmem>>, vector<64x16xbf16>,
    %c2_112 = arith.constant 2 : index
    %c0_113 = arith.constant 0 : index
    %c0_114 = arith.constant 0 : index
    %136 = vector.load %arg11[%c2_112, %c0_113, %c0_114] : memref<10x10x16xf32, #tpu.memory_space<vmem>>, vector<8x8x16xf32>
    %137 = vector.shape_cast %136 : vector<8x8x16xf32> to vector<64x16xf32>
    %138 = arith.truncf %137 : vector<64x16xf32> to vector<64x16xbf16>
    %c0_115 = arith.constant 0 : index
    %c96_116 = arith.constant 96 : index
    %139 = vector.load %arg12[%c0_115, %c96_116] : memref<64x144xbf16, #tpu.memory_space<vmem>>, vector<64x16xbf16>
    tpu.vector_store %arg12[%c0_115, %c96_116], %138 {strides = array<i32>} : memref<64x144xbf16, #tpu.memory_space<vmem>>, vector<64x16xbf16>,
    %c2_117 = arith.constant 2 : index
    %c1_118 = arith.constant 1 : index
    %c0_119 = arith.constant 0 : index
    %140 = vector.load %arg11[%c2_117, %c1_118, %c0_119] : memref<10x10x16xf32, #tpu.memory_space<vmem>>, vector<8x8x16xf32>
    %141 = vector.shape_cast %140 : vector<8x8x16xf32> to vector<64x16xf32>
    %142 = arith.truncf %141 : vector<64x16xf32> to vector<64x16xbf16>
    %c0_120 = arith.constant 0 : index
    %c112_121 = arith.constant 112 : index
    %143 = vector.load %arg12[%c0_120, %c112_121] : memref<64x144xbf16, #tpu.memory_space<vmem>>, vector<64x16xbf16>
    tpu.vector_store %arg12[%c0_120, %c112_121], %142 {strides = array<i32>} : memref<64x144xbf16, #tpu.memory_space<vmem>>, vector<64x16xbf16>,
    %c2_122 = arith.constant 2 : index
    %c2_123 = arith.constant 2 : index
    %c0_124 = arith.constant 0 : index
    %144 = vector.load %arg11[%c2_122, %c2_123, %c0_124] : memref<10x10x16xf32, #tpu.memory_space<vmem>>, vector<8x8x16xf32>
    %145 = vector.shape_cast %144 : vector<8x8x16xf32> to vector<64x16xf32>
    %146 = arith.truncf %145 : vector<64x16xf32> to vector<64x16xbf16>
    %c0_125 = arith.constant 0 : index
    %c128_126 = arith.constant 128 : index
    %147 = vector.load %arg12[%c0_125, %c128_126] : memref<64x144xbf16, #tpu.memory_space<vmem>>, vector<64x16xbf16>
    tpu.vector_store %arg12[%c0_125, %c128_126], %146 {strides = array<i32>} : memref<64x144xbf16, #tpu.memory_space<vmem>>, vector<64x16xbf16>,
    %c0_127 = arith.constant 0 : index
    %c0_128 = arith.constant 0 : index
    %148 = vector.load %arg12[%c0_127, %c0_128] : memref<64x144xbf16, #tpu.memory_space<vmem>>, vector<64x144xbf16>
    %c0_129 = arith.constant 0 : index
    %c0_130 = arith.constant 0 : index
    %149 = vector.load %arg6[%c0_129, %c0_130] : memref<144x16xbf16, #tpu.memory_space<vmem>>, vector<144x16xbf16>
    %cst_131 = arith.constant dense<0.000000e+00> : vector<64x16xf32>
    %150 = tpu.matmul %148, %149, %cst_131 {dimension_numbers = #tpu.dot_dimension_numbers<[1], [0], [0], [1], [0, 0, 1, 1], [], []>} : vector<64x144xbf16>, vector<144x16xbf16>, vector<64x16xf32> -> vector<64x16xf32>
    %c0_132 = arith.constant 0 : index
    %c0_133 = arith.constant 0 : index
    %151 = vector.load %arg7[%c0_132, %c0_133] : memref<1x16xf32, #tpu.memory_space<vmem>>, vector<1x16xf32>
    %152 = vector.broadcast %151 : vector<1x16xf32> to vector<64x16xf32>
    %153 = arith.addf %150, %152 : vector<64x16xf32>
    %154 = arith.addf %153, %1 : vector<64x16xf32>
    %c0_134 = arith.constant 0 : index
    %c0_135 = arith.constant 0 : index
    %c0_136 = arith.constant 0 : index
    %155 = vector.load %arg10[%c0_134, %c0_135, %c0_136] : memref<1x64x16xf32, #tpu.memory_space<vmem>>, vector<1x64x16xf32>
    %156 = vector.shape_cast %155 : vector<1x64x16xf32> to vector<64x16xf32>
    %157 = vector.shape_cast %154 : vector<64x16xf32> to vector<1x64x16xf32>
    tpu.vector_store %arg10[%c0_134, %c0_135, %c0_136], %157 {strides = array<i32>} : memref<1x64x16xf32, #tpu.memory_space<vmem>>, vector<1x64x16xf32>,
    return
  }
  func.func @transform_0(%arg0: i32) -> (i32, i32, i32) {
    %c0_i32 = arith.constant 0 : i32
    %c0_i32_0 = arith.constant 0 : i32
    %c0_i32_1 = arith.constant 0 : i32
    return %arg0, %c0_i32, %c0_i32_0 : i32, i32, i32
  }
  func.func @transform_1(%arg0: i32) -> (i32, i32) {
    %c0_i32 = arith.constant 0 : i32
    %c0_i32_0 = arith.constant 0 : i32
    %c0_i32_1 = arith.constant 0 : i32
    return %c0_i32, %c0_i32_0 : i32, i32
  }
  func.func @transform_2(%arg0: i32) -> (i32, i32) {
    %c0_i32 = arith.constant 0 : i32
    %c0_i32_0 = arith.constant 0 : i32
    %c0_i32_1 = arith.constant 0 : i32
    return %c0_i32, %c0_i32_0 : i32, i32
  }
  func.func @transform_3(%arg0: i32) -> (i32, i32) {
    %c0_i32 = arith.constant 0 : i32
    %c0_i32_0 = arith.constant 0 : i32
    %c0_i32_1 = arith.constant 0 : i32
    return %c0_i32, %c0_i32_0 : i32, i32
  }
  func.func @transform_4(%arg0: i32) -> (i32, i32) {
    %c0_i32 = arith.constant 0 : i32
    %c0_i32_0 = arith.constant 0 : i32
    %c0_i32_1 = arith.constant 0 : i32
    return %c0_i32, %c0_i32_0 : i32, i32
  }
  func.func @transform_5(%arg0: i32) -> (i32, i32) {
    %c0_i32 = arith.constant 0 : i32
    %c0_i32_0 = arith.constant 0 : i32
    %c0_i32_1 = arith.constant 0 : i32
    return %c0_i32, %c0_i32_0 : i32, i32
  }
  func.func @transform_6(%arg0: i32) -> (i32, i32) {
    %c0_i32 = arith.constant 0 : i32
    %c0_i32_0 = arith.constant 0 : i32
    %c0_i32_1 = arith.constant 0 : i32
    return %c0_i32, %c0_i32_0 : i32, i32
  }
  func.func @transform_7(%arg0: i32) -> (i32, i32) {
    %c0_i32 = arith.constant 0 : i32
    %c0_i32_0 = arith.constant 0 : i32
    %c0_i32_1 = arith.constant 0 : i32
    return %c0_i32, %c0_i32_0 : i32, i32
  }
  func.func @transform_8(%arg0: i32) -> (i32, i32) {
    %c0_i32 = arith.constant 0 : i32
    %c0_i32_0 = arith.constant 0 : i32
    %c0_i32_1 = arith.constant 0 : i32
    return %c0_i32, %c0_i32_0 : i32, i32
  }
  func.func @transform_9(%arg0: i32) -> (i32, i32, i32) {
    %c0_i32 = arith.constant 0 : i32
    %c0_i32_0 = arith.constant 0 : i32
    %c0_i32_1 = arith.constant 0 : i32
    return %arg0, %c0_i32, %c0_i32_0 : i32, i32, i32
  }
}

</mosaic_0001>

<llo_original>
// kernel: tpu_custom_call.1
$region0: #{tpu_custom_call.1}
  #allocation0 [shape = 'u32[]', space=smem, size = 0x4, offset = 0x4, fixed_abs, tag = 'smem constant byte address 0x4 - core index']
  #allocation1 [shape = 'u32[144,128]{1,0:T(1,128)}', space=vmem, size = 0x12000, scoped, tag = 'internal scratch']
  #allocation2 [shape = 'f32[10,10,16]{2,1,0:T(8,128)}', space=vmem, size = 0x14000, scoped, tag = 'scratch operand']
  #allocation3 [shape = 'bf16[64,144]{1,0:T(16,128)(2,1)}', space=vmem, size = 0x8000, scoped, tag = 'scratch operand']
  %s0 = inlined_call_operand.vmem [shape: f32[2,64,16], index: 0, kind: input, shape index: {}]
  %s1 = inlined_call_operand.vmem [shape: bf16[144,16], index: 1, kind: input, shape index: {}]
  %s2 = inlined_call_operand.vmem [shape: f32[1,16], index: 2, kind: input, shape index: {}]
  %s3 = inlined_call_operand.vmem [shape: f32[1,16], index: 3, kind: input, shape index: {}]
  %s4 = inlined_call_operand.vmem [shape: f32[1,16], index: 4, kind: input, shape index: {}]
  %s5 = inlined_call_operand.vmem [shape: bf16[144,16], index: 5, kind: input, shape index: {}]
  %s6 = inlined_call_operand.vmem [shape: f32[1,16], index: 6, kind: input, shape index: {}]
  %s7 = inlined_call_operand.vmem [shape: f32[1,16], index: 7, kind: input, shape index: {}]
  %s8 = inlined_call_operand.vmem [shape: f32[1,16], index: 8, kind: input, shape index: {}]
  %s9 = inlined_call_operand.vmem [shape: f32[2,64,16], index: 9, kind: output, shape index: {}]
  %s10 = sld [smem:[#allocation0]]
  $region69: #{tpu_custom_call.1} parent=0
    _
  %s12 = ssub.s32 1, %s10
  %s13 = scalar_select 0, %s12, %s10
  loop: start=0, step=1, limit=4
  $region2: #{tpu_custom_call.1} parent=0 // loop_pre_header
    _
  $region3: #{tpu_custom_call.1} parent=0 // loop_header
    %s15 = sphi 0, %s19
    %p16 = scmp.ge.s32.totalorder %s15, 4
    %s25 = sphi 0, %s27
    %s28 = sphi 0, %s25
    %s29 = sphi 0, %s28
    %s45 = sphi 0, %s29
    %s49 = sphi 0, %s49
    %s51 = sphi 0, %s49
    %s52 = sphi 0, %s51
    %s66 = sphi 0, %s52
    %s70 = sphi 0, %s70
    %s72 = sphi 0, %s70
    %s73 = sphi 0, %s72
    %s87 = sphi 0, %s73
    %s91 = sphi 0, %s91
    %s93 = sphi 0, %s91
    %s94 = sphi 0, %s93
    %s108 = sphi 0, %s94
    %s112 = sphi 0, %s112
    %s114 = sphi 0, %s112
    %s115 = sphi 0, %s114
    %s129 = sphi 0, %s115
    %s133 = sphi 0, %s133
    %s135 = sphi 0, %s133
    %s136 = sphi 0, %s135
    %s150 = sphi 0, %s136
    %s154 = sphi 0, %s154
    %s156 = sphi 0, %s154
    %s157 = sphi 0, %s156
    %s171 = sphi 0, %s157
    %s175 = sphi 0, %s175
    %s177 = sphi 0, %s175
    %s178 = sphi 0, %s177
    %s192 = sphi 0, %s178
    %s196 = sphi 0, %s196
    %s198 = sphi 0, %s196
    %s199 = sphi 0, %s198
    %s213 = sphi 0, %s199
    %s219 = sphi 0, %s221
    %s222 = sphi 0, %s219
    %s223 = sphi 0, %s222
    %s239 = sphi 0, %s223
  $region4: #{tpu_custom_call.1} parent=0 // loop_header_branch
    %18 = sbr.rel (%p16) target = $region8
  $region5: #{tpu_custom_call.1} parent=0 // loop_body
    %s20 = ssub.s32 %s15, 1
    %s21 = ssub.s32 %s15, 2
    %s22 = sadd.s32 %s15, 1
    %s23 = ssub.s32 %s15, %s22
    %p24 = scmp.eq.s32.totalorder %s23, 0
    %s26 = sadd.s32 %s25, 1
    %s27 = scalar_select %p24, %s25, %s26
    %p30 = pneg %p24
    %p31 = scmp.eq.s32.totalorder %s15, 1
    %p32 = por %p30, %p31
    %p33 = scmp.ne.s32.totalorder %s25, %s28
    %p34 = scmp.eq.s32.totalorder %s15, 0
    %p35 = por %p33, %p34
    %p36 = scmp.ne.s32.totalorder %s25, %s28
    %p37 = scmp.eq.s32.totalorder %s20, 1
    %p38 = por %p36, %p37
    %p39 = scmp.ne.s32.totalorder %s28, %s29
    %p40 = scmp.eq.s32.totalorder %s20, 0
    %p41 = por %p39, %p40
    %p42 = scmp.ne.s32.totalorder %s28, %s29
    %p43 = scmp.eq.s32.totalorder %s21, 1
    %p44 = por %p42, %p43
    %p46 = scmp.ne.s32.totalorder %s29, %s45
    %p47 = scmp.eq.s32.totalorder %s21, 0
    %p48 = por %p46, %p47
    %s50 = sadd.s32 %s49, 1
    %p53 = scmp.eq.s32.totalorder %s15, 1
    %p54 = scmp.ne.s32.totalorder %s49, %s51
    %p55 = scmp.eq.s32.totalorder %s15, 0
    %p56 = por %p54, %p55
    %p57 = scmp.ne.s32.totalorder %s49, %s51
    %p58 = scmp.eq.s32.totalorder %s20, 1
    %p59 = por %p57, %p58
    %p60 = scmp.ne.s32.totalorder %s51, %s52
    %p61 = scmp.eq.s32.totalorder %s20, 0
    %p62 = por %p60, %p61
    %p63 = scmp.ne.s32.totalorder %s51, %s52
    %p64 = scmp.eq.s32.totalorder %s21, 1
    %p65 = por %p63, %p64
    %p67 = scmp.ne.s32.totalorder %s52, %s66
    %p68 = scmp.eq.s32.totalorder %s21, 0
    %p69 = por %p67, %p68
    %s71 = sadd.s32 %s70, 1
    %p74 = scmp.eq.s32.totalorder %s15, 1
    %p75 = scmp.ne.s32.totalorder %s70, %s72
    %p76 = scmp.eq.s32.totalorder %s15, 0
    %p77 = por %p75, %p76
    %p78 = scmp.ne.s32.totalorder %s70, %s72
    %p79 = scmp.eq.s32.totalorder %s20, 1
    %p80 = por %p78, %p79
    %p81 = scmp.ne.s32.totalorder %s72, %s73
    %p82 = scmp.eq.s32.totalorder %s20, 0
    %p83 = por %p81, %p82
    %p84 = scmp.ne.s32.totalorder %s72, %s73
    %p85 = scmp.eq.s32.totalorder %s21, 1
    %p86 = por %p84, %p85
    %p88 = scmp.ne.s32.totalorder %s73, %s87
    %p89 = scmp.eq.s32.totalorder %s21, 0
    %p90 = por %p88, %p89
    %s92 = sadd.s32 %s91, 1
    %p95 = scmp.eq.s32.totalorder %s15, 1
    %p96 = scmp.ne.s32.totalorder %s91, %s93
    %p97 = scmp.eq.s32.totalorder %s15, 0
    %p98 = por %p96, %p97
    %p99 = scmp.ne.s32.totalorder %s91, %s93
    %p100 = scmp.eq.s32.totalorder %s20, 1
    %p101 = por %p99, %p100
    %p102 = scmp.ne.s32.totalorder %s93, %s94
    %p103 = scmp.eq.s32.totalorder %s20, 0
    %p104 = por %p102, %p103
    %p105 = scmp.ne.s32.totalorder %s93, %s94
    %p106 = scmp.eq.s32.totalorder %s21, 1
    %p107 = por %p105, %p106
    %p109 = scmp.ne.s32.totalorder %s94, %s108
    %p110 = scmp.eq.s32.totalorder %s21, 0
    %p111 = por %p109, %p110
    %s113 = sadd.s32 %s112, 1
    %p116 = scmp.eq.s32.totalorder %s15, 1
    %p117 = scmp.ne.s32.totalorder %s112, %s114
    %p118 = scmp.eq.s32.totalorder %s15, 0
    %p119 = por %p117, %p118
    %p120 = scmp.ne.s32.totalorder %s112, %s114
    %p121 = scmp.eq.s32.totalorder %s20, 1
    %p122 = por %p120, %p121
    %p123 = scmp.ne.s32.totalorder %s114, %s115
    %p124 = scmp.eq.s32.totalorder %s20, 0
    %p125 = por %p123, %p124
    %p126 = scmp.ne.s32.totalorder %s114, %s115
    %p127 = scmp.eq.s32.totalorder %s21, 1
    %p128 = por %p126, %p127
    %p130 = scmp.ne.s32.totalorder %s115, %s129
    %p131 = scmp.eq.s32.totalorder %s21, 0
    %p132 = por %p130, %p131
    %s134 = sadd.s32 %s133, 1
    %p137 = scmp.eq.s32.totalorder %s15, 1
    %p138 = scmp.ne.s32.totalorder %s133, %s135
    %p139 = scmp.eq.s32.totalorder %s15, 0
    %p140 = por %p138, %p139
    %p141 = scmp.ne.s32.totalorder %s133, %s135
    %p142 = scmp.eq.s32.totalorder %s20, 1
    %p143 = por %p141, %p142
    %p144 = scmp.ne.s32.totalorder %s135, %s136
    %p145 = scmp.eq.s32.totalorder %s20, 0
    %p146 = por %p144, %p145
    %p147 = scmp.ne.s32.totalorder %s135, %s136
    %p148 = scmp.eq.s32.totalorder %s21, 1
    %p149 = por %p147, %p148
    %p151 = scmp.ne.s32.totalorder %s136, %s150
    %p152 = scmp.eq.s32.totalorder %s21, 0
    %p153 = por %p151, %p152
    %s155 = sadd.s32 %s154, 1
    %p158 = scmp.eq.s32.totalorder %s15, 1
    %p159 = scmp.ne.s32.totalorder %s154, %s156
    %p160 = scmp.eq.s32.totalorder %s15, 0
    %p161 = por %p159, %p160
    %p162 = scmp.ne.s32.totalorder %s154, %s156
    %p163 = scmp.eq.s32.totalorder %s20, 1
    %p164 = por %p162, %p163
    %p165 = scmp.ne.s32.totalorder %s156, %s157
    %p166 = scmp.eq.s32.totalorder %s20, 0
    %p167 = por %p165, %p166
    %p168 = scmp.ne.s32.totalorder %s156, %s157
    %p169 = scmp.eq.s32.totalorder %s21, 1
    %p170 = por %p168, %p169
    %p172 = scmp.ne.s32.totalorder %s157, %s171
    %p173 = scmp.eq.s32.totalorder %s21, 0
    %p174 = por %p172, %p173
    %s176 = sadd.s32 %s175, 1
    %p179 = scmp.eq.s32.totalorder %s15, 1
    %p180 = scmp.ne.s32.totalorder %s175, %s177
    %p181 = scmp.eq.s32.totalorder %s15, 0
    %p182 = por %p180, %p181
    %p183 = scmp.ne.s32.totalorder %s175, %s177
    %p184 = scmp.eq.s32.totalorder %s20, 1
    %p185 = por %p183, %p184
    %p186 = scmp.ne.s32.totalorder %s177, %s178
    %p187 = scmp.eq.s32.totalorder %s20, 0
    %p188 = por %p186, %p187
    %p189 = scmp.ne.s32.totalorder %s177, %s178
    %p190 = scmp.eq.s32.totalorder %s21, 1
    %p191 = por %p189, %p190
    %p193 = scmp.ne.s32.totalorder %s178, %s192
    %p194 = scmp.eq.s32.totalorder %s21, 0
    %p195 = por %p193, %p194
    %s197 = sadd.s32 %s196, 1
    %p200 = scmp.eq.s32.totalorder %s15, 1
    %p201 = scmp.ne.s32.totalorder %s196, %s198
    %p202 = scmp.eq.s32.totalorder %s15, 0
    %p203 = por %p201, %p202
    %p204 = scmp.ne.s32.totalorder %s196, %s198
    %p205 = scmp.eq.s32.totalorder %s20, 1
    %p206 = por %p204, %p205
    %p207 = scmp.ne.s32.totalorder %s198, %s199
    %p208 = scmp.eq.s32.totalorder %s20, 0
    %p209 = por %p207, %p208
    %p210 = scmp.ne.s32.totalorder %s198, %s199
    %p211 = scmp.eq.s32.totalorder %s21, 1
    %p212 = por %p210, %p211
    %p214 = scmp.ne.s32.totalorder %s199, %s213
    %p215 = scmp.eq.s32.totalorder %s21, 0
    %p216 = por %p214, %p215
    %s217 = ssub.s32 %s15, %s22
    %p218 = scmp.eq.s32.totalorder %s217, 0
    %s220 = sadd.s32 %s219, 1
    %s221 = scalar_select %p218, %s219, %s220
    %p224 = pneg %p218
    %p225 = scmp.eq.s32.totalorder %s15, 1
    %p226 = por %p224, %p225
    %p227 = scmp.ne.s32.totalorder %s219, %s222
    %p228 = scmp.eq.s32.totalorder %s15, 0
    %p229 = por %p227, %p228
    %p230 = scmp.ne.s32.totalorder %s219, %s222
    %p231 = scmp.eq.s32.totalorder %s20, 1
    %p232 = por %p230, %p231
    %p233 = scmp.ne.s32.totalorder %s222, %s223
    %p234 = scmp.eq.s32.totalorder %s20, 0
    %p235 = por %p233, %p234
    %p236 = scmp.ne.s32.totalorder %s222, %s223
    %p237 = scmp.eq.s32.totalorder %s21, 1
    %p238 = por %p236, %p237
    %p240 = scmp.ne.s32.totalorder %s223, %s239
    %p241 = scmp.eq.s32.totalorder %s21, 0
    %p242 = por %p240, %p241
    %p243 = scmp.le.s32.totalorder 1, %s15
    %p244 = scmp.lt.s32.totalorder %s15, 3
    %p245 = pnand %p243, %p244
    %p246 = pneg %p245
    // Predicated region
    $region9: #{tpu_custom_call.1} parent=5 // pred_check
      _
    $region10: #{tpu_custom_call.1} parent=5 // pred_check_branch
      %248 = sbr.rel (%p245) target = $region12
    $region11: #{tpu_custom_call.1} parent=5 // pred_region
      %s249 = ssub.s32 %s15, 1
      // Predicated region
      $region13: #{tpu_custom_call.1} parent=11 // pred_check
        %p250 = pneg %p62
      $region14: #{tpu_custom_call.1} parent=11 // pred_check_branch
        %252 = sbr.rel (%p250) target = $region16
      $region15: #{tpu_custom_call.1} parent=11 // pred_region
        _
      $region16: #{tpu_custom_call.1} parent=11 // pred_fallthru
        _
      // Predicated region
      $region17: #{tpu_custom_call.1} parent=11 // pred_check
        %p253 = pneg %p83
      $region18: #{tpu_custom_call.1} parent=11 // pred_check_branch
        %255 = sbr.rel (%p253) target = $region20
      $region19: #{tpu_custom_call.1} parent=11 // pred_region
        _
      $region20: #{tpu_custom_call.1} parent=11 // pred_fallthru
        _
      // Predicated region
      $region21: #{tpu_custom_call.1} parent=11 // pred_check
        %p256 = pneg %p104
      $region22: #{tpu_custom_call.1} parent=11 // pred_check_branch
        %258 = sbr.rel (%p256) target = $region24
      $region23: #{tpu_custom_call.1} parent=11 // pred_region
        _
      $region24: #{tpu_custom_call.1} parent=11 // pred_fallthru
        _
      // Predicated region
      $region25: #{tpu_custom_call.1} parent=11 // pred_check
        %p259 = pneg %p125
      $region26: #{tpu_custom_call.1} parent=11 // pred_check_branch
        %261 = sbr.rel (%p259) target = $region28
      $region27: #{tpu_custom_call.1} parent=11 // pred_region
        _
      $region28: #{tpu_custom_call.1} parent=11 // pred_fallthru
        _
      // Predicated region
      $region29: #{tpu_custom_call.1} parent=11 // pred_check
        %p262 = pneg %p146
      $region30: #{tpu_custom_call.1} parent=11 // pred_check_branch
        %264 = sbr.rel (%p262) target = $region32
      $region31: #{tpu_custom_call.1} parent=11 // pred_region
        _
      $region32: #{tpu_custom_call.1} parent=11 // pred_fallthru
        _
      // Predicated region
      $region33: #{tpu_custom_call.1} parent=11 // pred_check
        %p265 = pneg %p167
      $region34: #{tpu_custom_call.1} parent=11 // pred_check_branch
        %267 = sbr.rel (%p265) target = $region36
      $region35: #{tpu_custom_call.1} parent=11 // pred_region
        _
      $region36: #{tpu_custom_call.1} parent=11 // pred_fallthru
        _
      // Predicated region
      $region37: #{tpu_custom_call.1} parent=11 // pred_check
        %p268 = pneg %p188
      $region38: #{tpu_custom_call.1} parent=11 // pred_check_branch
        %270 = sbr.rel (%p268) target = $region40
      $region39: #{tpu_custom_call.1} parent=11 // pred_region
        _
      $region40: #{tpu_custom_call.1} parent=11 // pred_fallthru
        _
      // Predicated region
      $region41: #{tpu_custom_call.1} parent=11 // pred_check
        %p271 = pneg %p209
      $region42: #{tpu_custom_call.1} parent=11 // pred_check_branch
        %273 = sbr.rel (%p271) target = $region44
      $region43: #{tpu_custom_call.1} parent=11 // pred_region
        _
      $region44: #{tpu_custom_call.1} parent=11 // pred_fallthru
        _
    $region12: #{tpu_custom_call.1} parent=5 // pred_fallthru
      _
    %p274 = scmp.lt.s32.totalorder %s15, 2
    // Predicated region
    $region45: #{tpu_custom_call.1} parent=5 // pred_check
      %p275 = pneg %p274
    $region46: #{tpu_custom_call.1} parent=5 // pred_check_branch
      %277 = sbr.rel (%p275) target = $region48
    $region47: #{tpu_custom_call.1} parent=5 // pred_region
      // Predicated region
      $region49: #{tpu_custom_call.1} parent=47 // pred_check
        %p278 = pneg %p35
      $region50: #{tpu_custom_call.1} parent=47 // pred_check_branch
        %280 = sbr.rel (%p278) target = $region52
      $region51: #{tpu_custom_call.1} parent=47 // pred_region
        %p281 = scmp.lt.s32.totalorder %s15, 1
        %s282 = scalar_select %p281, %s15, 1
        %s283 = smul.addr %s282, 8
        %s284 = smul.addr %s283, 8
        %s285 = scalar_lea.vmem %s0, %s284
      $region52: #{tpu_custom_call.1} parent=47 // pred_fallthru
        _
    $region48: #{tpu_custom_call.1} parent=5 // pred_fallthru
      _
    %p286 = scmp.le.s32.totalorder 1, %s15
    %p287 = scmp.lt.s32.totalorder %s15, 3
    %p288 = pnand %p286, %p287
    %p289 = pneg %p288
    // Predicated region
    $region53: #{tpu_custom_call.1} parent=5 // pred_check
      _
    $region54: #{tpu_custom_call.1} parent=5 // pred_check_branch
      %291 = sbr.rel (%p288) target = $region56
    $region55: #{tpu_custom_call.1} parent=5 // pred_region
      %s292 = ssub.s32 %s15, 1
      %p293 = scmp.lt.s32.totalorder %s20, 1
      %s294 = scalar_select %p293, %s20, 1
      %s295 = smul.addr %s294, 8
      %s296 = smul.addr %s295, 8
      %s297 = scalar_lea.vmem %s0, %s296
      %p298 = pneg %p41
      %p299 = pneg %p38
      %p300 = pneg %p62
      %p301 = pneg %p59
      %p302 = pneg %p83
      %p303 = pneg %p80
      %p304 = pneg %p104
      %p305 = pneg %p101
      %p306 = pneg %p125
      %p307 = pneg %p122
      %p308 = pneg %p146
      %p309 = pneg %p143
      %p310 = pneg %p167
      %p311 = pneg %p164
      %p312 = pneg %p188
      %p313 = pneg %p185
      %p314 = pneg %p209
      %p315 = pneg %p206
      %p316 = pneg %p235
      %p317 = pneg %p232
      %p318 = scmp.lt.s32.totalorder %s20, 1
      %s319 = scalar_select %p318, %s20, 1
      %s320 = smul.addr %s319, 8
      %s321 = smul.addr %s320, 8
      %s322 = scalar_lea.vmem %s9, %s321
      %p323 = scmp.lt.s32.totalorder %s20, 1
      %s324 = scalar_select %p323, %s20, 1
      %s325 = smul.addr %s324, 8
      %s326 = smul.addr %s325, 8
      %s327 = scalar_lea.vmem %s0, %s326
      %p328 = scmp.lt.s32.totalorder %s20, 1
      %s329 = scalar_select %p328, %s20, 1
      %s330 = smul.addr %s329, 8
      %s331 = smul.addr %s330, 8
      %s332 = scalar_lea.vmem %s9, %s331
      %v334 = vld [vmem:[%s327] sm:$0xff]
      %v335 = vld [vmem:[%s327 + $0x8] sm:$0xff]
      %v336 = vld [vmem:[%s327 + $0x10] sm:$0xff]
      %v337 = vld [vmem:[%s327 + $0x18] sm:$0xff]
      %v338 = vld [vmem:[%s327 + $0x20] sm:$0xff]
      %v339 = vld [vmem:[%s327 + $0x28] sm:$0xff]
      %v340 = vld [vmem:[%s327 + $0x30] sm:$0xff]
      %v341 = vld [vmem:[%s327 + $0x38] sm:$0xff]
      %vm342 = vcmask 130048
      %343 = vst.msk [vmem:[#allocation2] sm:$0xff] %vm342, 0.0
      %vm344 = vcmask 123904
      %345 = vst.msk [vmem:[#allocation2 + $0x8] sm:$0x3] %vm344, 0.0
      %s346 = scalar_lea.vmem [#allocation2], 144
      %347 = vst.msk [vmem:[%s346] sm:$0xff] %vm342, 0.0
      %348 = vst.msk [vmem:[%s346 + $0x8] sm:$0x3] %vm344, 0.0
      %vm349 = vcmask 122880
      %350 = vst.msk [vmem:[#allocation2] sm:$0x1] %vm349, 0.0
      %351 = vst.msk [vmem:[#allocation2 + $0x10] sm:$0x1] %vm349, 0.0
      %352 = vst.msk [vmem:[#allocation2 + $0x20] sm:$0x1] %vm349, 0.0
      %353 = vst.msk [vmem:[#allocation2 + $0x30] sm:$0x1] %vm349, 0.0
      %354 = vst.msk [vmem:[#allocation2 + $0x40] sm:$0x1] %vm349, 0.0
      %355 = vst.msk [vmem:[#allocation2 + $0x50] sm:$0x1] %vm349, 0.0
      %356 = vst.msk [vmem:[#allocation2 + $0x60] sm:$0x1] %vm349, 0.0
      %357 = vst.msk [vmem:[#allocation2 + $0x70] sm:$0x1] %vm349, 0.0
      %358 = vst.msk [vmem:[#allocation2 + $0x80] sm:$0x1] %vm349, 0.0
      %359 = vst.msk [vmem:[#allocation2 + $0x90] sm:$0x1] %vm349, 0.0
      %360 = vst.msk [vmem:[#allocation2 + $0x9] sm:$0x1] %vm349, 0.0
      %361 = vst.msk [vmem:[#allocation2 + $0x19] sm:$0x1] %vm349, 0.0
      %362 = vst.msk [vmem:[#allocation2 + $0x29] sm:$0x1] %vm349, 0.0
      %363 = vst.msk [vmem:[#allocation2 + $0x39] sm:$0x1] %vm349, 0.0
      %364 = vst.msk [vmem:[#allocation2 + $0x49] sm:$0x1] %vm349, 0.0
      %365 = vst.msk [vmem:[#allocation2 + $0x59] sm:$0x1] %vm349, 0.0
      %366 = vst.msk [vmem:[#allocation2 + $0x69] sm:$0x1] %vm349, 0.0
      %367 = vst.msk [vmem:[#allocation2 + $0x79] sm:$0x1] %vm349, 0.0
      %368 = vst.msk [vmem:[#allocation2 + $0x89] sm:$0x1] %vm349, 0.0
      %369 = vst.msk [vmem:[#allocation2 + $0x99] sm:$0x1] %vm349, 0.0
      %v370 = vld [vmem:[%s3] sm:$0x1]
      %v371 = vld [vmem:[%s4] sm:$0x1]
      %v372 = vsel %vm342, %v334, 0.0
      %v373 = vsel %vm342, %v335, 0.0
      %v374 = vadd.f32 %v372, %v373
      %v375 = vsel %vm342, %v336, 0.0
      %v376 = vadd.f32 %v374, %v375
      %v377 = vsel %vm342, %v337, 0.0
      %v378 = vadd.f32 %v376, %v377
      %v379 = vsel %vm342, %v338, 0.0
      %v380 = vadd.f32 %v378, %v379
      %v381 = vsel %vm342, %v339, 0.0
      %v382 = vadd.f32 %v380, %v381
      %v383 = vsel %vm342, %v340, 0.0
      %v384 = vadd.f32 %v382, %v383
      %v385 = vsel %vm342, %v341, 0.0
      %v386 = vadd.f32 %v384, %v385
      %387 = vadd.xlane.f32.xlu0 %v386
      %v388 = vpop.xlane.xlu0 %387
      %v389 = vrot.slane %v388, 4
      %v390 = vadd.f32 %v388, %v389
      %v391 = vrot.slane %v390, 2
      %v392 = vadd.f32 %v390, %v391
      %v393 = vrot.slane %v392, 1
      %v394 = vadd.f32 %v392, %v393
      %s395 = vtos %v394
      %v396 = vrcp.pop 1024.0
      %s397 = vtos %v396
      %s398 = smul.f32 %s395, %s397
      %v399 = vstv %s398
      %v400 = vsub.f32 %v334, %v399
      %v401 = vsub.f32 %v335, %v399
      %v402 = vsub.f32 %v336, %v399
      %v403 = vsub.f32 %v337, %v399
      %v404 = vsub.f32 %v338, %v399
      %v405 = vsub.f32 %v339, %v399
      %v406 = vsub.f32 %v340, %v399
      %v407 = vsub.f32 %v341, %v399
      %v408 = vmul.f32 %v400, %v400
      %v409 = vmul.f32 %v401, %v401
      %v410 = vmul.f32 %v402, %v402
      %v411 = vmul.f32 %v403, %v403
      %v412 = vmul.f32 %v404, %v404
      %v413 = vmul.f32 %v405, %v405
      %v414 = vmul.f32 %v406, %v406
      %v415 = vmul.f32 %v407, %v407
      %v416 = vsel %vm342, %v408, 0.0
      %v417 = vsel %vm342, %v409, 0.0
      %v418 = vadd.f32 %v416, %v417
      %v419 = vsel %vm342, %v410, 0.0
      %v420 = vadd.f32 %v418, %v419
      %v421 = vsel %vm342, %v411, 0.0
      %v422 = vadd.f32 %v420, %v421
      %v423 = vsel %vm342, %v412, 0.0
      %v424 = vadd.f32 %v422, %v423
      %v425 = vsel %vm342, %v413, 0.0
      %v426 = vadd.f32 %v424, %v425
      %v427 = vsel %vm342, %v414, 0.0
      %v428 = vadd.f32 %v426, %v427
      %v429 = vsel %vm342, %v415, 0.0
      %v430 = vadd.f32 %v428, %v429
      %431 = vadd.xlane.f32.xlu0 %v430
      %v432 = vpop.xlane.xlu0 %431
      %v433 = vrot.slane %v432, 4
      %v434 = vadd.f32 %v432, %v433
      %v435 = vrot.slane %v434, 2
      %v436 = vadd.f32 %v434, %v435
      %v437 = vrot.slane %v436, 1
      %v438 = vadd.f32 %v436, %v437
      %s439 = vtos %v438
      %v440 = vrcp.pop 1024.0
      %s441 = vtos %v440
      %s442 = smul.f32 %s439, %s441
      %s443 = sadd.f32 %s442, 1e-05
      %v444 = vstv %s443
      %v445 = vrsqrt.pop %v444
      %s446 = vtos %v445
      %v447 = vstv %s446
      %v448 = vmul.f32 %v400, %v447
      %v449 = vmul.f32 %v401, %v447
      %v450 = vmul.f32 %v402, %v447
      %v451 = vmul.f32 %v403, %v447
      %v452 = vmul.f32 %v404, %v447
      %v453 = vmul.f32 %v405, %v447
      %v454 = vmul.f32 %v406, %v447
      %v455 = vmul.f32 %v407, %v447
      %v457 = vlaneseq
      %v458 = vshrl.u32 %v457, 7
      %v459 = vsub.s32 0, %v458
      %v460 = vrot.slane %v370, %v459
      %v462 = vmul.f32 %v448, %v460
      %v463 = vmul.f32 %v449, %v460
      %v464 = vmul.f32 %v450, %v460
      %v465 = vmul.f32 %v451, %v460
      %v466 = vmul.f32 %v452, %v460
      %v467 = vmul.f32 %v453, %v460
      %v468 = vmul.f32 %v454, %v460
      %v469 = vmul.f32 %v455, %v460
      %v471 = vlaneseq
      %v472 = vshrl.u32 %v471, 7
      %v473 = vsub.s32 0, %v472
      %v474 = vrot.slane %v371, %v473
      %v476 = vadd.f32 %v462, %v474
      %v477 = vadd.f32 %v463, %v474
      %v478 = vadd.f32 %v464, %v474
      %v479 = vadd.f32 %v465, %v474
      %v480 = vadd.f32 %v466, %v474
      %v481 = vadd.f32 %v467, %v474
      %v482 = vadd.f32 %v468, %v474
      %v483 = vadd.f32 %v469, %v474
      %v484 = vxor.u32 %v476, 2147483648
      %v485 = vxor.u32 %v477, 2147483648
      %v486 = vxor.u32 %v478, 2147483648
      %v487 = vxor.u32 %v479, 2147483648
      %v488 = vxor.u32 %v480, 2147483648
      %v489 = vxor.u32 %v481, 2147483648
      %v490 = vxor.u32 %v482, 2147483648
      %v491 = vxor.u32 %v483, 2147483648
      %v492 = vmul.f32 %v484, 1.442695
      %v493 = vpow.pop %v492
      %v494 = vmul.f32 %v485, 1.442695
      %v495 = vpow.pop %v494
      %v496 = vmul.f32 %v486, 1.442695
      %v497 = vpow.pop %v496
      %v498 = vmul.f32 %v487, 1.442695
      %v499 = vpow.pop %v498
      %v500 = vmul.f32 %v488, 1.442695
      %v501 = vpow.pop %v500
      %v502 = vmul.f32 %v489, 1.442695
      %v503 = vpow.pop %v502
      %v504 = vmul.f32 %v490, 1.442695
      %v505 = vpow.pop %v504
      %v506 = vmul.f32 %v491, 1.442695
      %v507 = vpow.pop %v506
      %v508 = vadd.f32 %v493, 1.0
      %v509 = vadd.f32 %v495, 1.0
      %v510 = vadd.f32 %v497, 1.0
      %v511 = vadd.f32 %v499, 1.0
      %v512 = vadd.f32 %v501, 1.0
      %v513 = vadd.f32 %v503, 1.0
      %v514 = vadd.f32 %v505, 1.0
      %v515 = vadd.f32 %v507, 1.0
      %v516 = vrcp.pop %v508
      %v517 = vmul.f32 1.0, %v516
      %v518 = vrcp.pop %v509
      %v519 = vmul.f32 1.0, %v518
      %v520 = vrcp.pop %v510
      %v521 = vmul.f32 1.0, %v520
      %v522 = vrcp.pop %v511
      %v523 = vmul.f32 1.0, %v522
      %v524 = vrcp.pop %v512
      %v525 = vmul.f32 1.0, %v524
      %v526 = vrcp.pop %v513
      %v527 = vmul.f32 1.0, %v526
      %v528 = vrcp.pop %v514
      %v529 = vmul.f32 1.0, %v528
      %v530 = vrcp.pop %v515
      %v531 = vmul.f32 1.0, %v530
      %v532 = vmul.f32 %v476, %v517
      %v533 = vmul.f32 %v477, %v519
      %v534 = vmul.f32 %v478, %v521
      %v535 = vmul.f32 %v479, %v523
      %v536 = vmul.f32 %v480, %v525
      %v537 = vmul.f32 %v481, %v527
      %v538 = vmul.f32 %v482, %v529
      %v539 = vmul.f32 %v483, %v531
      %s540 = scalar_lea.vmem [#allocation2], 16
      %541 = vst.msk [vmem:[%s540 + $0x1] sm:$0xff] %vm342, %v532
      %542 = vst.msk [vmem:[%s540 + $0x11] sm:$0xff] %vm342, %v533
      %543 = vst.msk [vmem:[%s540 + $0x21] sm:$0xff] %vm342, %v534
      %544 = vst.msk [vmem:[%s540 + $0x31] sm:$0xff] %vm342, %v535
      %545 = vst.msk [vmem:[%s540 + $0x41] sm:$0xff] %vm342, %v536
      %546 = vst.msk [vmem:[%s540 + $0x51] sm:$0xff] %vm342, %v537
      %547 = vst.msk [vmem:[%s540 + $0x61] sm:$0xff] %vm342, %v538
      %548 = vst.msk [vmem:[%s540 + $0x71] sm:$0xff] %vm342, %v539
      %v549 = vld [vmem:[#allocation2] sm:$0xff]
      %v550 = vld [vmem:[#allocation2 + $0x10] sm:$0xff]
      %v551 = vld [vmem:[#allocation2 + $0x20] sm:$0xff]
      %v552 = vld [vmem:[#allocation2 + $0x30] sm:$0xff]
      %v553 = vld [vmem:[#allocation2 + $0x40] sm:$0xff]
      %v554 = vld [vmem:[#allocation2 + $0x50] sm:$0xff]
      %v555 = vld [vmem:[#allocation2 + $0x60] sm:$0xff]
      %v556 = vld [vmem:[#allocation2 + $0x70] sm:$0xff]
      %v557 = vpack.c.bf16 %v550, %v549
      %v558 = vpack.c.bf16 %v552, %v551
      %v559 = vpack.c.bf16 %v554, %v553
      %v560 = vpack.c.bf16 %v556, %v555
      %561 = vst.msk [vmem:[#allocation3] sm:$0xff] %vm342, %v557
      %562 = vst.msk [vmem:[#allocation3 + $0x10] sm:$0xff] %vm342, %v558
      %563 = vst.msk [vmem:[#allocation3 + $0x20] sm:$0xff] %vm342, %v559
      %564 = vst.msk [vmem:[#allocation3 + $0x30] sm:$0xff] %vm342, %v560
      %v565 = vld [vmem:[#allocation2 + $0x1] sm:$0xff]
      %v566 = vld [vmem:[#allocation2 + $0x11] sm:$0xff]
      %v567 = vld [vmem:[#allocation2 + $0x21] sm:$0xff]
      %v568 = vld [vmem:[#allocation2 + $0x31] sm:$0xff]
      %v569 = vld [vmem:[#allocation2 + $0x41] sm:$0xff]
      %v570 = vld [vmem:[#allocation2 + $0x51] sm:$0xff]
      %v571 = vld [vmem:[#allocation2 + $0x61] sm:$0xff]
      %v572 = vld [vmem:[#allocation2 + $0x71] sm:$0xff]
      %v573 = vpack.c.bf16 %v566, %v565
      %v574 = vpack.c.bf16 %v568, %v567
      %v575 = vpack.c.bf16 %v570, %v569
      %v576 = vpack.c.bf16 %v572, %v571
      %581 = vrot.lane.b32.xlu0 %v573, 16
      %v582 = vpop.permute.xlu0 %581
      %583 = vrot.lane.b32.xlu0 %v574, 16
      %v584 = vpop.permute.xlu0 %583
      %585 = vrot.lane.b32.xlu0 %v575, 16
      %v586 = vpop.permute.xlu0 %585
      %587 = vrot.lane.b32.xlu0 %v576, 16
      %v588 = vpop.permute.xlu0 %587
      %vm593 = vcmask 261248
      %594 = vst.msk [vmem:[#allocation3] sm:$0xff] %vm593, %v582
      %595 = vst.msk [vmem:[#allocation3 + $0x10] sm:$0xff] %vm593, %v584
      %596 = vst.msk [vmem:[#allocation3 + $0x20] sm:$0xff] %vm593, %v586
      %597 = vst.msk [vmem:[#allocation3 + $0x30] sm:$0xff] %vm593, %v588
      %v598 = vld [vmem:[#allocation2 + $0x2] sm:$0xff]
      %v599 = vld [vmem:[#allocation2 + $0x12] sm:$0xff]
      %v600 = vld [vmem:[#allocation2 + $0x22] sm:$0xff]
      %v601 = vld [vmem:[#allocation2 + $0x32] sm:$0xff]
      %v602 = vld [vmem:[#allocation2 + $0x42] sm:$0xff]
      %v603 = vld [vmem:[#allocation2 + $0x52] sm:$0xff]
      %v604 = vld [vmem:[#allocation2 + $0x62] sm:$0xff]
      %v605 = vld [vmem:[#allocation2 + $0x72] sm:$0xff]
      %v606 = vpack.c.bf16 %v599, %v598
      %v607 = vpack.c.bf16 %v601, %v600
      %v608 = vpack.c.bf16 %v603, %v602
      %v609 = vpack.c.bf16 %v605, %v604
      %614 = vrot.lane.b32.xlu0 %v606, 32
      %v615 = vpop.permute.xlu0 %614
      %616 = vrot.lane.b32.xlu0 %v607, 32
      %v617 = vpop.permute.xlu0 %616
      %618 = vrot.lane.b32.xlu0 %v608, 32
      %v619 = vpop.permute.xlu0 %618
      %620 = vrot.lane.b32.xlu0 %v609, 32
      %v621 = vpop.permute.xlu0 %620
      %vm626 = vcmask 392448
      %627 = vst.msk [vmem:[#allocation3] sm:$0xff] %vm626, %v615
      %628 = vst.msk [vmem:[#allocation3 + $0x10] sm:$0xff] %vm626, %v617
      %629 = vst.msk [vmem:[#allocation3 + $0x20] sm:$0xff] %vm626, %v619
      %630 = vst.msk [vmem:[#allocation3 + $0x30] sm:$0xff] %vm626, %v621
      %v631 = vld [vmem:[%s540] sm:$0xff]
      %v632 = vld [vmem:[%s540 + $0x10] sm:$0xff]
      %v633 = vld [vmem:[%s540 + $0x20] sm:$0xff]
      %v634 = vld [vmem:[%s540 + $0x30] sm:$0xff]
      %v635 = vld [vmem:[%s540 + $0x40] sm:$0xff]
      %v636 = vld [vmem:[%s540 + $0x50] sm:$0xff]
      %v637 = vld [vmem:[%s540 + $0x60] sm:$0xff]
      %v638 = vld [vmem:[%s540 + $0x70] sm:$0xff]
      %v639 = vpack.c.bf16 %v632, %v631
      %v640 = vpack.c.bf16 %v634, %v633
      %v641 = vpack.c.bf16 %v636, %v635
      %v642 = vpack.c.bf16 %v638, %v637
      %647 = vrot.lane.b32.xlu0 %v639, 48
      %v648 = vpop.permute.xlu0 %647
      %649 = vrot.lane.b32.xlu0 %v640, 48
      %v650 = vpop.permute.xlu0 %649
      %651 = vrot.lane.b32.xlu0 %v641, 48
      %v652 = vpop.permute.xlu0 %651
      %653 = vrot.lane.b32.xlu0 %v642, 48
      %v654 = vpop.permute.xlu0 %653
      %vm659 = vcmask 523648
      %660 = vst.msk [vmem:[#allocation3] sm:$0xff] %vm659, %v648
      %661 = vst.msk [vmem:[#allocation3 + $0x10] sm:$0xff] %vm659, %v650
      %662 = vst.msk [vmem:[#allocation3 + $0x20] sm:$0xff] %vm659, %v652
      %663 = vst.msk [vmem:[#allocation3 + $0x30] sm:$0xff] %vm659, %v654
      %v664 = vld [vmem:[%s540 + $0x1] sm:$0xff]
      %v665 = vld [vmem:[%s540 + $0x11] sm:$0xff]
      %v666 = vld [vmem:[%s540 + $0x21] sm:$0xff]
      %v667 = vld [vmem:[%s540 + $0x31] sm:$0xff]
      %v668 = vld [vmem:[%s540 + $0x41] sm:$0xff]
      %v669 = vld [vmem:[%s540 + $0x51] sm:$0xff]
      %v670 = vld [vmem:[%s540 + $0x61] sm:$0xff]
      %v671 = vld [vmem:[%s540 + $0x71] sm:$0xff]
      %v672 = vpack.c.bf16 %v665, %v664
      %v673 = vpack.c.bf16 %v667, %v666
      %v674 = vpack.c.bf16 %v669, %v668
      %v675 = vpack.c.bf16 %v671, %v670
      %680 = vrot.lane.b32.xlu0 %v672, 64
      %v681 = vpop.permute.xlu0 %680
      %682 = vrot.lane.b32.xlu0 %v673, 64
      %v683 = vpop.permute.xlu0 %682
      %684 = vrot.lane.b32.xlu0 %v674, 64
      %v685 = vpop.permute.xlu0 %684
      %686 = vrot.lane.b32.xlu0 %v675, 64
      %v687 = vpop.permute.xlu0 %686
      %vm692 = vcmask 654848
      %693 = vst.msk [vmem:[#allocation3] sm:$0xff] %vm692, %v681
      %694 = vst.msk [vmem:[#allocation3 + $0x10] sm:$0xff] %vm692, %v683
      %695 = vst.msk [vmem:[#allocation3 + $0x20] sm:$0xff] %vm692, %v685
      %696 = vst.msk [vmem:[#allocation3 + $0x30] sm:$0xff] %vm692, %v687
      %v697 = vld [vmem:[%s540 + $0x2] sm:$0xff]
      %v698 = vld [vmem:[%s540 + $0x12] sm:$0xff]
      %v699 = vld [vmem:[%s540 + $0x22] sm:$0xff]
      %v700 = vld [vmem:[%s540 + $0x32] sm:$0xff]
      %v701 = vld [vmem:[%s540 + $0x42] sm:$0xff]
      %v702 = vld [vmem:[%s540 + $0x52] sm:$0xff]
      %v703 = vld [vmem:[%s540 + $0x62] sm:$0xff]
      %v704 = vld [vmem:[%s540 + $0x72] sm:$0xff]
      %v705 = vpack.c.bf16 %v698, %v697
      %v706 = vpack.c.bf16 %v700, %v699
      %v707 = vpack.c.bf16 %v702, %v701
      %v708 = vpack.c.bf16 %v704, %v703
      %713 = vrot.lane.b32.xlu0 %v705, 80
      %v714 = vpop.permute.xlu0 %713
      %715 = vrot.lane.b32.xlu0 %v706, 80
      %v716 = vpop.permute.xlu0 %715
      %717 = vrot.lane.b32.xlu0 %v707, 80
      %v718 = vpop.permute.xlu0 %717
      %719 = vrot.lane.b32.xlu0 %v708, 80
      %v720 = vpop.permute.xlu0 %719
      %vm725 = vcmask 786048
      %726 = vst.msk [vmem:[#allocation3] sm:$0xff] %vm725, %v714
      %727 = vst.msk [vmem:[#allocation3 + $0x10] sm:$0xff] %vm725, %v716
      %728 = vst.msk [vmem:[#allocation3 + $0x20] sm:$0xff] %vm725, %v718
      %729 = vst.msk [vmem:[#allocation3 + $0x30] sm:$0xff] %vm725, %v720
      %s730 = scalar_lea.vmem [#allocation2], 32
      %v731 = vld [vmem:[%s730] sm:$0xff]
      %v732 = vld [vmem:[%s730 + $0x10] sm:$0xff]
      %v733 = vld [vmem:[%s730 + $0x20] sm:$0xff]
      %v734 = vld [vmem:[%s730 + $0x30] sm:$0xff]
      %v735 = vld [vmem:[%s730 + $0x40] sm:$0xff]
      %v736 = vld [vmem:[%s730 + $0x50] sm:$0xff]
      %v737 = vld [vmem:[%s730 + $0x60] sm:$0xff]
      %v738 = vld [vmem:[%s730 + $0x70] sm:$0xff]
      %v739 = vpack.c.bf16 %v732, %v731
      %v740 = vpack.c.bf16 %v734, %v733
      %v741 = vpack.c.bf16 %v736, %v735
      %v742 = vpack.c.bf16 %v738, %v737
      %747 = vrot.lane.b32.xlu0 %v739, 96
      %v748 = vpop.permute.xlu0 %747
      %749 = vrot.lane.b32.xlu0 %v740, 96
      %v750 = vpop.permute.xlu0 %749
      %751 = vrot.lane.b32.xlu0 %v741, 96
      %v752 = vpop.permute.xlu0 %751
      %753 = vrot.lane.b32.xlu0 %v742, 96
      %v754 = vpop.permute.xlu0 %753
      %vm759 = vcmask 917248
      %760 = vst.msk [vmem:[#allocation3] sm:$0xff] %vm759, %v748
      %761 = vst.msk [vmem:[#allocation3 + $0x10] sm:$0xff] %vm759, %v750
      %762 = vst.msk [vmem:[#allocation3 + $0x20] sm:$0xff] %vm759, %v752
      %763 = vst.msk [vmem:[#allocation3 + $0x30] sm:$0xff] %vm759, %v754
      %v764 = vld [vmem:[%s730 + $0x1] sm:$0xff]
      %v765 = vld [vmem:[%s730 + $0x11] sm:$0xff]
      %v766 = vld [vmem:[%s730 + $0x21] sm:$0xff]
      %v767 = vld [vmem:[%s730 + $0x31] sm:$0xff]
      %v768 = vld [vmem:[%s730 + $0x41] sm:$0xff]
      %v769 = vld [vmem:[%s730 + $0x51] sm:$0xff]
      %v770 = vld [vmem:[%s730 + $0x61] sm:$0xff]
      %v771 = vld [vmem:[%s730 + $0x71] sm:$0xff]
      %v772 = vpack.c.bf16 %v765, %v764
      %v773 = vpack.c.bf16 %v767, %v766
      %v774 = vpack.c.bf16 %v769, %v768
      %v775 = vpack.c.bf16 %v771, %v770
      %780 = vrot.lane.b32.xlu0 %v772, 112
      %v781 = vpop.permute.xlu0 %780
      %782 = vrot.lane.b32.xlu0 %v773, 112
      %v783 = vpop.permute.xlu0 %782
      %784 = vrot.lane.b32.xlu0 %v774, 112
      %v785 = vpop.permute.xlu0 %784
      %786 = vrot.lane.b32.xlu0 %v775, 112
      %v787 = vpop.permute.xlu0 %786
      %vm792 = vcmask 1048448
      %793 = vst.msk [vmem:[#allocation3] sm:$0xff] %vm792, %v781
      %794 = vst.msk [vmem:[#allocation3 + $0x10] sm:$0xff] %vm792, %v783
      %795 = vst.msk [vmem:[#allocation3 + $0x20] sm:$0xff] %vm792, %v785
      %796 = vst.msk [vmem:[#allocation3 + $0x30] sm:$0xff] %vm792, %v787
      %v797 = vld [vmem:[%s730 + $0x2] sm:$0xff]
      %v798 = vld [vmem:[%s730 + $0x12] sm:$0xff]
      %v799 = vld [vmem:[%s730 + $0x22] sm:$0xff]
      %v800 = vld [vmem:[%s730 + $0x32] sm:$0xff]
      %v801 = vld [vmem:[%s730 + $0x42] sm:$0xff]
      %v802 = vld [vmem:[%s730 + $0x52] sm:$0xff]
      %v803 = vld [vmem:[%s730 + $0x62] sm:$0xff]
      %v804 = vld [vmem:[%s730 + $0x72] sm:$0xff]
      %v805 = vpack.c.bf16 %v798, %v797
      %v806 = vpack.c.bf16 %v800, %v799
      %v807 = vpack.c.bf16 %v802, %v801
      %v808 = vpack.c.bf16 %v804, %v803
      %809 = vst.msk [vmem:[#allocation3 + $0x8] sm:$0xff] %vm342, %v805
      %810 = vst.msk [vmem:[#allocation3 + $0x18] sm:$0xff] %vm342, %v806
      %811 = vst.msk [vmem:[#allocation3 + $0x28] sm:$0xff] %vm342, %v807
      %812 = vst.msk [vmem:[#allocation3 + $0x38] sm:$0xff] %vm342, %v808
      %v813 = vld [vmem:[#allocation3] sm:$0xff]
      %v814 = vld [vmem:[#allocation3 + $0x8] sm:$0xff]
      %v815 = vld [vmem:[#allocation3 + $0x10] sm:$0xff]
      %v816 = vld [vmem:[#allocation3 + $0x18] sm:$0xff]
      %v817 = vld [vmem:[#allocation3 + $0x20] sm:$0xff]
      %v818 = vld [vmem:[#allocation3 + $0x28] sm:$0xff]
      %v819 = vld [vmem:[#allocation3 + $0x30] sm:$0xff]
      %v820 = vld [vmem:[#allocation3 + $0x38] sm:$0xff]
      %v821 = vld [vmem:[%s1] sm:$0xf]
      %v822 = vld [vmem:[%s1 + $0x4] sm:$0xf]
      %v823 = vld [vmem:[%s1 + $0x8] sm:$0xf]
      %v824 = vld [vmem:[%s1 + $0xc] sm:$0xf]
      %v825 = vld [vmem:[%s1 + $0x10] sm:$0xf]
      %v826 = vld [vmem:[%s1 + $0x14] sm:$0xf]
      %v827 = vld [vmem:[%s1 + $0x18] sm:$0xf]
      %v828 = vld [vmem:[%s1 + $0x1c] sm:$0xf]
      %v829 = vld [vmem:[%s1 + $0x20] sm:$0xf]
      %v830 = vld [vmem:[%s1 + $0x24] sm:$0xf]
      %v831 = vld [vmem:[%s1 + $0x28] sm:$0xf]
      %v832 = vld [vmem:[%s1 + $0x2c] sm:$0xf]
      %v833 = vld [vmem:[%s1 + $0x30] sm:$0xf]
      %v834 = vld [vmem:[%s1 + $0x34] sm:$0xf]
      %v835 = vld [vmem:[%s1 + $0x38] sm:$0xf]
      %v836 = vld [vmem:[%s1 + $0x3c] sm:$0xf]
      %v837 = vld [vmem:[%s1 + $0x40] sm:$0xf]
      %v838 = vld [vmem:[%s1 + $0x44] sm:$0xf]
      %v839 = vld [vmem:[%s2] sm:$0x1]
      %v841 = vlaneseq
      %v842 = vshrl.u32 %v841, 7
      %v843 = vsub.s32 0, %v842
      %v844 = vrot.slane %v839, %v843
      %v864 = vunpack.c.l.b16 %v821
      %v865 = vunpack.c.l.b16 %v822
      %v866 = vunpack.c.l.b16 %v823
      %v867 = vunpack.c.l.b16 %v824
      %v868 = vunpack.c.l.b16 %v825
      %v869 = vunpack.c.l.b16 %v826
      %v870 = vunpack.c.l.b16 %v827
      %v871 = vunpack.c.l.b16 %v828
      %v872 = vunpack.c.l.b16 %v829
      %v873 = vunpack.c.l.b16 %v830
      %v874 = vunpack.c.l.b16 %v831
      %v875 = vunpack.c.l.b16 %v832
      %v876 = vunpack.c.l.b16 %v833
      %v877 = vunpack.c.l.b16 %v834
      %v878 = vunpack.c.l.b16 %v835
      %v879 = vunpack.c.l.b16 %v836
      %v880 = vunpack.c.l.b16 %v837
      %v881 = vunpack.c.l.b16 %v838
      %v882 = vpack.c.b16 %v865, %v864
      %v883 = vpack.c.b16 %v867, %v866
      %v884 = vpack.c.b16 %v869, %v868
      %v885 = vpack.c.b16 %v871, %v870
      %v886 = vpack.c.b16 %v873, %v872
      %v887 = vpack.c.b16 %v875, %v874
      %v888 = vpack.c.b16 %v877, %v876
      %v889 = vpack.c.b16 %v879, %v878
      %v890 = vpack.c.b16 %v881, %v880
      %v901 = vsel %vm342, %v814, 0
      %v904 = vsel %vm342, %v816, 0
      %v907 = vsel %vm342, %v818, 0
      %v910 = vsel %vm342, %v820, 0
      %912 = vmatprep.subr.bf16.mxu0 0
      %913 = vmatpush1.bf16.msra.mxu0 %v882
      %914 = vmatprep.subr.bf16.mxu0 0
      %915 = vmatpush1.bf16.msra.mxu0 %v883
      %916 = vmatprep.subr.bf16.mxu0 0
      %917 = vmatpush1.bf16.msra.mxu0 %v884
      %918 = vmatprep.subr.bf16.mxu0 0
      %919 = vmatpush1.bf16.msra.mxu0 %v885
      %920 = vmatprep.subr.bf16.mxu0 0
      %921 = vmatpush1.bf16.msra.mxu0 %v886
      %922 = vmatprep.subr.bf16.mxu0 0
      %923 = vmatpush1.bf16.msra.mxu0 %v887
      %924 = vmatprep.subr.bf16.mxu0 0
      %925 = vmatpush1.bf16.msra.mxu0 %v888
      %926 = vmatprep.subr.bf16.mxu0 0
      %927 = vmatpush1.bf16.msra.mxu0 %v889
      %928 = vmatprep.subr.bf16.mxu0 0
      %929 = vmatpush1.bf16.msra.mxu0 %v890
      %930 = vmatprep.subr.bf16.mxu0 0
      %931 = vmatpush1.bf16.msra.mxu0 0
      %932 = vmatprep.subr.bf16.mxu0 0
      %933 = vmatpush1.bf16.msra.mxu0 0
      %934 = vmatprep.subr.bf16.mxu0 0
      %935 = vmatpush1.bf16.msra.mxu0 0
      %936 = vmatprep.subr.bf16.mxu0 0
      %937 = vmatpush1.bf16.msra.mxu0 0
      %938 = vmatprep.subr.bf16.mxu0 0
      %939 = vmatpush1.bf16.msra.mxu0 0
      %940 = vmatprep.subr.bf16.mxu0 0
      %941 = vmatpush1.bf16.msra.mxu0 0
      %942 = vmatprep.subr.bf16.mxu0 0
      %943 = vmatpush1.bf16.msra.mxu0 0
      %944 = vmatprep.mubr.bf16.mxu0 %v901
      %945 = vmatmul.mubr.bf16.gmra.mrb[0].mxu0 %v813
      %v946 = vpop.f32.mrb[0].mxu0
      %v947 = vadd.f32 %v844, %v946
      %v948 = vpop.f32.mrb[0].mxu0
      %v949 = vpop.f32.mrb[0].mxu0
      %v950 = vadd.f32 %v844, %v949
      %v951 = vpop.f32.mrb[0].mxu0
      %952 = vmatprep.mubr.bf16.mxu0 %v904
      %953 = vmatmul.mubr.bf16.gmra.mrb[0].mxu0 %v815
      %v954 = vpop.f32.mrb[0].mxu0
      %v955 = vadd.f32 %v844, %v954
      %v956 = vpop.f32.mrb[0].mxu0
      %v957 = vpop.f32.mrb[0].mxu0
      %v958 = vadd.f32 %v844, %v957
      %v959 = vpop.f32.mrb[0].mxu0
      %960 = vmatprep.mubr.bf16.mxu0 %v907
      %961 = vmatmul.mubr.bf16.gmra.mrb[0].mxu0 %v817
      %v962 = vpop.f32.mrb[0].mxu0
      %v963 = vadd.f32 %v844, %v962
      %v964 = vpop.f32.mrb[0].mxu0
      %v965 = vpop.f32.mrb[0].mxu0
      %v966 = vadd.f32 %v844, %v965
      %v967 = vpop.f32.mrb[0].mxu0
      %968 = vmatprep.mubr.bf16.mxu0 %v910
      %969 = vmatmul.mubr.bf16.gmra.mrb[0].mxu0 %v819
      %v970 = vpop.f32.mrb[0].mxu0
      %v971 = vadd.f32 %v844, %v970
      %v972 = vpop.f32.mrb[0].mxu0
      %v973 = vpop.f32.mrb[0].mxu0
      %v974 = vadd.f32 %v844, %v973
      %v975 = vpop.f32.mrb[0].mxu0
      %976 = vdwg.mxu0
      %v977 = vld [vmem:[%s7] sm:$0x1]
      %v978 = vld [vmem:[%s8] sm:$0x1]
      %v979 = vsel %vm342, %v947, 0.0
      %v980 = vsel %vm342, %v950, 0.0
      %v981 = vadd.f32 %v979, %v980
      %v982 = vsel %vm342, %v955, 0.0
      %v983 = vadd.f32 %v981, %v982
      %v984 = vsel %vm342, %v958, 0.0
      %v985 = vadd.f32 %v983, %v984
      %v986 = vsel %vm342, %v963, 0.0
      %v987 = vadd.f32 %v985, %v986
      %v988 = vsel %vm342, %v966, 0.0
      %v989 = vadd.f32 %v987, %v988
      %v990 = vsel %vm342, %v971, 0.0
      %v991 = vadd.f32 %v989, %v990
      %v992 = vsel %vm342, %v974, 0.0
      %v993 = vadd.f32 %v991, %v992
      %994 = vadd.xlane.f32.xlu0 %v993
      %v995 = vpop.xlane.xlu0 %994
      %v996 = vrot.slane %v995, 4
      %v997 = vadd.f32 %v995, %v996
      %v998 = vrot.slane %v997, 2
      %v999 = vadd.f32 %v997, %v998
      %v1000 = vrot.slane %v999, 1
      %v1001 = vadd.f32 %v999, %v1000
      %s1002 = vtos %v1001
      %v1003 = vrcp.pop 1024.0
      %s1004 = vtos %v1003
      %s1005 = smul.f32 %s1002, %s1004
      %v1006 = vstv %s1005
      %v1007 = vsub.f32 %v947, %v1006
      %v1008 = vsub.f32 %v950, %v1006
      %v1009 = vsub.f32 %v955, %v1006
      %v1010 = vsub.f32 %v958, %v1006
      %v1011 = vsub.f32 %v963, %v1006
      %v1012 = vsub.f32 %v966, %v1006
      %v1013 = vsub.f32 %v971, %v1006
      %v1014 = vsub.f32 %v974, %v1006
      %v1015 = vmul.f32 %v1007, %v1007
      %v1016 = vmul.f32 %v1008, %v1008
      %v1017 = vmul.f32 %v1009, %v1009
      %v1018 = vmul.f32 %v1010, %v1010
      %v1019 = vmul.f32 %v1011, %v1011
      %v1020 = vmul.f32 %v1012, %v1012
      %v1021 = vmul.f32 %v1013, %v1013
      %v1022 = vmul.f32 %v1014, %v1014
      %v1023 = vsel %vm342, %v1015, 0.0
      %v1024 = vsel %vm342, %v1016, 0.0
      %v1025 = vadd.f32 %v1023, %v1024
      %v1026 = vsel %vm342, %v1017, 0.0
      %v1027 = vadd.f32 %v1025, %v1026
      %v1028 = vsel %vm342, %v1018, 0.0
      %v1029 = vadd.f32 %v1027, %v1028
      %v1030 = vsel %vm342, %v1019, 0.0
      %v1031 = vadd.f32 %v1029, %v1030
      %v1032 = vsel %vm342, %v1020, 0.0
      %v1033 = vadd.f32 %v1031, %v1032
      %v1034 = vsel %vm342, %v1021, 0.0
      %v1035 = vadd.f32 %v1033, %v1034
      %v1036 = vsel %vm342, %v1022, 0.0
      %v1037 = vadd.f32 %v1035, %v1036
      %1038 = vadd.xlane.f32.xlu0 %v1037
      %v1039 = vpop.xlane.xlu0 %1038
      %v1040 = vrot.slane %v1039, 4
      %v1041 = vadd.f32 %v1039, %v1040
      %v1042 = vrot.slane %v1041, 2
      %v1043 = vadd.f32 %v1041, %v1042
      %v1044 = vrot.slane %v1043, 1
      %v1045 = vadd.f32 %v1043, %v1044
      %s1046 = vtos %v1045
      %v1047 = vrcp.pop 1024.0
      %s1048 = vtos %v1047
      %s1049 = smul.f32 %s1046, %s1048
      %s1050 = sadd.f32 %s1049, 1e-05
      %v1051 = vstv %s1050
      %v1052 = vrsqrt.pop %v1051
      %s1053 = vtos %v1052
      %v1054 = vstv %s1053
      %v1055 = vmul.f32 %v1007, %v1054
      %v1056 = vmul.f32 %v1008, %v1054
      %v1057 = vmul.f32 %v1009, %v1054
      %v1058 = vmul.f32 %v1010, %v1054
      %v1059 = vmul.f32 %v1011, %v1054
      %v1060 = vmul.f32 %v1012, %v1054
      %v1061 = vmul.f32 %v1013, %v1054
      %v1062 = vmul.f32 %v1014, %v1054
      %v1064 = vlaneseq
      %v1065 = vshrl.u32 %v1064, 7
      %v1066 = vsub.s32 0, %v1065
      %v1067 = vrot.slane %v977, %v1066
      %v1069 = vmul.f32 %v1055, %v1067
      %v1070 = vmul.f32 %v1056, %v1067
      %v1071 = vmul.f32 %v1057, %v1067
      %v1072 = vmul.f32 %v1058, %v1067
      %v1073 = vmul.f32 %v1059, %v1067
      %v1074 = vmul.f32 %v1060, %v1067
      %v1075 = vmul.f32 %v1061, %v1067
      %v1076 = vmul.f32 %v1062, %v1067
      %v1078 = vlaneseq
      %v1079 = vshrl.u32 %v1078, 7
      %v1080 = vsub.s32 0, %v1079
      %v1081 = vrot.slane %v978, %v1080
      %v1083 = vadd.f32 %v1069, %v1081
      %v1084 = vadd.f32 %v1070, %v1081
      %v1085 = vadd.f32 %v1071, %v1081
      %v1086 = vadd.f32 %v1072, %v1081
      %v1087 = vadd.f32 %v1073, %v1081
      %v1088 = vadd.f32 %v1074, %v1081
      %v1089 = vadd.f32 %v1075, %v1081
      %v1090 = vadd.f32 %v1076, %v1081
      %v1091 = vxor.u32 %v1083, 2147483648
      %v1092 = vxor.u32 %v1084, 2147483648
      %v1093 = vxor.u32 %v1085, 2147483648
      %v1094 = vxor.u32 %v1086, 2147483648
      %v1095 = vxor.u32 %v1087, 2147483648
      %v1096 = vxor.u32 %v1088, 2147483648
      %v1097 = vxor.u32 %v1089, 2147483648
      %v1098 = vxor.u32 %v1090, 2147483648
      %v1099 = vmul.f32 %v1091, 1.442695
      %v1100 = vpow.pop %v1099
      %v1101 = vmul.f32 %v1092, 1.442695
      %v1102 = vpow.pop %v1101
      %v1103 = vmul.f32 %v1093, 1.442695
      %v1104 = vpow.pop %v1103
      %v1105 = vmul.f32 %v1094, 1.442695
      %v1106 = vpow.pop %v1105
      %v1107 = vmul.f32 %v1095, 1.442695
      %v1108 = vpow.pop %v1107
      %v1109 = vmul.f32 %v1096, 1.442695
      %v1110 = vpow.pop %v1109
      %v1111 = vmul.f32 %v1097, 1.442695
      %v1112 = vpow.pop %v1111
      %v1113 = vmul.f32 %v1098, 1.442695
      %v1114 = vpow.pop %v1113
      %v1115 = vadd.f32 %v1100, 1.0
      %v1116 = vadd.f32 %v1102, 1.0
      %v1117 = vadd.f32 %v1104, 1.0
      %v1118 = vadd.f32 %v1106, 1.0
      %v1119 = vadd.f32 %v1108, 1.0
      %v1120 = vadd.f32 %v1110, 1.0
      %v1121 = vadd.f32 %v1112, 1.0
      %v1122 = vadd.f32 %v1114, 1.0
      %v1123 = vrcp.pop %v1115
      %v1124 = vmul.f32 1.0, %v1123
      %v1125 = vrcp.pop %v1116
      %v1126 = vmul.f32 1.0, %v1125
      %v1127 = vrcp.pop %v1117
      %v1128 = vmul.f32 1.0, %v1127
      %v1129 = vrcp.pop %v1118
      %v1130 = vmul.f32 1.0, %v1129
      %v1131 = vrcp.pop %v1119
      %v1132 = vmul.f32 1.0, %v1131
      %v1133 = vrcp.pop %v1120
      %v1134 = vmul.f32 1.0, %v1133
      %v1135 = vrcp.pop %v1121
      %v1136 = vmul.f32 1.0, %v1135
      %v1137 = vrcp.pop %v1122
      %v1138 = vmul.f32 1.0, %v1137
      %v1139 = vmul.f32 %v1083, %v1124
      %v1140 = vmul.f32 %v1084, %v1126
      %v1141 = vmul.f32 %v1085, %v1128
      %v1142 = vmul.f32 %v1086, %v1130
      %v1143 = vmul.f32 %v1087, %v1132
      %v1144 = vmul.f32 %v1088, %v1134
      %v1145 = vmul.f32 %v1089, %v1136
      %v1146 = vmul.f32 %v1090, %v1138
      %1147 = vst.msk [vmem:[%s540 + $0x1] sm:$0xff] %vm342, %v1139
      %1148 = vst.msk [vmem:[%s540 + $0x11] sm:$0xff] %vm342, %v1140
      %1149 = vst.msk [vmem:[%s540 + $0x21] sm:$0xff] %vm342, %v1141
      %1150 = vst.msk [vmem:[%s540 + $0x31] sm:$0xff] %vm342, %v1142
      %1151 = vst.msk [vmem:[%s540 + $0x41] sm:$0xff] %vm342, %v1143
      %1152 = vst.msk [vmem:[%s540 + $0x51] sm:$0xff] %vm342, %v1144
      %1153 = vst.msk [vmem:[%s540 + $0x61] sm:$0xff] %vm342, %v1145
      %1154 = vst.msk [vmem:[%s540 + $0x71] sm:$0xff] %vm342, %v1146
      %v1155 = vld [vmem:[#allocation2] sm:$0xff]
      %v1156 = vld [vmem:[#allocation2 + $0x10] sm:$0xff]
      %v1157 = vld [vmem:[#allocation2 + $0x20] sm:$0xff]
      %v1158 = vld [vmem:[#allocation2 + $0x30] sm:$0xff]
      %v1159 = vld [vmem:[#allocation2 + $0x40] sm:$0xff]
      %v1160 = vld [vmem:[#allocation2 + $0x50] sm:$0xff]
      %v1161 = vld [vmem:[#allocation2 + $0x60] sm:$0xff]
      %v1162 = vld [vmem:[#allocation2 + $0x70] sm:$0xff]
      %v1163 = vpack.c.bf16 %v1156, %v1155
      %v1164 = vpack.c.bf16 %v1158, %v1157
      %v1165 = vpack.c.bf16 %v1160, %v1159
      %v1166 = vpack.c.bf16 %v1162, %v1161
      %1167 = vst.msk [vmem:[#allocation3] sm:$0xff] %vm342, %v1163
      %1168 = vst.msk [vmem:[#allocation3 + $0x10] sm:$0xff] %vm342, %v1164
      %1169 = vst.msk [vmem:[#allocation3 + $0x20] sm:$0xff] %vm342, %v1165
      %1170 = vst.msk [vmem:[#allocation3 + $0x30] sm:$0xff] %vm342, %v1166
      %v1171 = vld [vmem:[#allocation2 + $0x1] sm:$0xff]
      %v1172 = vld [vmem:[#allocation2 + $0x11] sm:$0xff]
      %v1173 = vld [vmem:[#allocation2 + $0x21] sm:$0xff]
      %v1174 = vld [vmem:[#allocation2 + $0x31] sm:$0xff]
      %v1175 = vld [vmem:[#allocation2 + $0x41] sm:$0xff]
      %v1176 = vld [vmem:[#allocation2 + $0x51] sm:$0xff]
      %v1177 = vld [vmem:[#allocation2 + $0x61] sm:$0xff]
      %v1178 = vld [vmem:[#allocation2 + $0x71] sm:$0xff]
      %v1179 = vpack.c.bf16 %v1172, %v1171
      %v1180 = vpack.c.bf16 %v1174, %v1173
      %v1181 = vpack.c.bf16 %v1176, %v1175
      %v1182 = vpack.c.bf16 %v1178, %v1177
      %1187 = vrot.lane.b32.xlu0 %v1179, 16
      %v1188 = vpop.permute.xlu0 %1187
      %1189 = vrot.lane.b32.xlu0 %v1180, 16
      %v1190 = vpop.permute.xlu0 %1189
      %1191 = vrot.lane.b32.xlu0 %v1181, 16
      %v1192 = vpop.permute.xlu0 %1191
      %1193 = vrot.lane.b32.xlu0 %v1182, 16
      %v1194 = vpop.permute.xlu0 %1193
      %1199 = vst.msk [vmem:[#allocation3] sm:$0xff] %vm593, %v1188
      %1200 = vst.msk [vmem:[#allocation3 + $0x10] sm:$0xff] %vm593, %v1190
      %1201 = vst.msk [vmem:[#allocation3 + $0x20] sm:$0xff] %vm593, %v1192
      %1202 = vst.msk [vmem:[#allocation3 + $0x30] sm:$0xff] %vm593, %v1194
      %v1203 = vld [vmem:[#allocation2 + $0x2] sm:$0xff]
      %v1204 = vld [vmem:[#allocation2 + $0x12] sm:$0xff]
      %v1205 = vld [vmem:[#allocation2 + $0x22] sm:$0xff]
      %v1206 = vld [vmem:[#allocation2 + $0x32] sm:$0xff]
      %v1207 = vld [vmem:[#allocation2 + $0x42] sm:$0xff]
      %v1208 = vld [vmem:[#allocation2 + $0x52] sm:$0xff]
      %v1209 = vld [vmem:[#allocation2 + $0x62] sm:$0xff]
      %v1210 = vld [vmem:[#allocation2 + $0x72] sm:$0xff]
      %v1211 = vpack.c.bf16 %v1204, %v1203
      %v1212 = vpack.c.bf16 %v1206, %v1205
      %v1213 = vpack.c.bf16 %v1208, %v1207
      %v1214 = vpack.c.bf16 %v1210, %v1209
      %1219 = vrot.lane.b32.xlu0 %v1211, 32
      %v1220 = vpop.permute.xlu0 %1219
      %1221 = vrot.lane.b32.xlu0 %v1212, 32
      %v1222 = vpop.permute.xlu0 %1221
      %1223 = vrot.lane.b32.xlu0 %v1213, 32
      %v1224 = vpop.permute.xlu0 %1223
      %1225 = vrot.lane.b32.xlu0 %v1214, 32
      %v1226 = vpop.permute.xlu0 %1225
      %1231 = vst.msk [vmem:[#allocation3] sm:$0xff] %vm626, %v1220
      %1232 = vst.msk [vmem:[#allocation3 + $0x10] sm:$0xff] %vm626, %v1222
      %1233 = vst.msk [vmem:[#allocation3 + $0x20] sm:$0xff] %vm626, %v1224
      %1234 = vst.msk [vmem:[#allocation3 + $0x30] sm:$0xff] %vm626, %v1226
      %v1235 = vld [vmem:[%s540] sm:$0xff]
      %v1236 = vld [vmem:[%s540 + $0x10] sm:$0xff]
      %v1237 = vld [vmem:[%s540 + $0x20] sm:$0xff]
      %v1238 = vld [vmem:[%s540 + $0x30] sm:$0xff]
      %v1239 = vld [vmem:[%s540 + $0x40] sm:$0xff]
      %v1240 = vld [vmem:[%s540 + $0x50] sm:$0xff]
      %v1241 = vld [vmem:[%s540 + $0x60] sm:$0xff]
      %v1242 = vld [vmem:[%s540 + $0x70] sm:$0xff]
      %v1243 = vpack.c.bf16 %v1236, %v1235
      %v1244 = vpack.c.bf16 %v1238, %v1237
      %v1245 = vpack.c.bf16 %v1240, %v1239
      %v1246 = vpack.c.bf16 %v1242, %v1241
      %1251 = vrot.lane.b32.xlu0 %v1243, 48
      %v1252 = vpop.permute.xlu0 %1251
      %1253 = vrot.lane.b32.xlu0 %v1244, 48
      %v1254 = vpop.permute.xlu0 %1253
      %1255 = vrot.lane.b32.xlu0 %v1245, 48
      %v1256 = vpop.permute.xlu0 %1255
      %1257 = vrot.lane.b32.xlu0 %v1246, 48
      %v1258 = vpop.permute.xlu0 %1257
      %1263 = vst.msk [vmem:[#allocation3] sm:$0xff] %vm659, %v1252
      %1264 = vst.msk [vmem:[#allocation3 + $0x10] sm:$0xff] %vm659, %v1254
      %1265 = vst.msk [vmem:[#allocation3 + $0x20] sm:$0xff] %vm659, %v1256
      %1266 = vst.msk [vmem:[#allocation3 + $0x30] sm:$0xff] %vm659, %v1258
      %v1267 = vld [vmem:[%s540 + $0x1] sm:$0xff]
      %v1268 = vld [vmem:[%s540 + $0x11] sm:$0xff]
      %v1269 = vld [vmem:[%s540 + $0x21] sm:$0xff]
      %v1270 = vld [vmem:[%s540 + $0x31] sm:$0xff]
      %v1271 = vld [vmem:[%s540 + $0x41] sm:$0xff]
      %v1272 = vld [vmem:[%s540 + $0x51] sm:$0xff]
      %v1273 = vld [vmem:[%s540 + $0x61] sm:$0xff]
      %v1274 = vld [vmem:[%s540 + $0x71] sm:$0xff]
      %v1275 = vpack.c.bf16 %v1268, %v1267
      %v1276 = vpack.c.bf16 %v1270, %v1269
      %v1277 = vpack.c.bf16 %v1272, %v1271
      %v1278 = vpack.c.bf16 %v1274, %v1273
      %1283 = vrot.lane.b32.xlu0 %v1275, 64
      %v1284 = vpop.permute.xlu0 %1283
      %1285 = vrot.lane.b32.xlu0 %v1276, 64
      %v1286 = vpop.permute.xlu0 %1285
      %1287 = vrot.lane.b32.xlu0 %v1277, 64
      %v1288 = vpop.permute.xlu0 %1287
      %1289 = vrot.lane.b32.xlu0 %v1278, 64
      %v1290 = vpop.permute.xlu0 %1289
      %1295 = vst.msk [vmem:[#allocation3] sm:$0xff] %vm692, %v1284
      %1296 = vst.msk [vmem:[#allocation3 + $0x10] sm:$0xff] %vm692, %v1286
      %1297 = vst.msk [vmem:[#allocation3 + $0x20] sm:$0xff] %vm692, %v1288
      %1298 = vst.msk [vmem:[#allocation3 + $0x30] sm:$0xff] %vm692, %v1290
      %v1299 = vld [vmem:[%s540 + $0x2] sm:$0xff]
      %v1300 = vld [vmem:[%s540 + $0x12] sm:$0xff]
      %v1301 = vld [vmem:[%s540 + $0x22] sm:$0xff]
      %v1302 = vld [vmem:[%s540 + $0x32] sm:$0xff]
      %v1303 = vld [vmem:[%s540 + $0x42] sm:$0xff]
      %v1304 = vld [vmem:[%s540 + $0x52] sm:$0xff]
      %v1305 = vld [vmem:[%s540 + $0x62] sm:$0xff]
      %v1306 = vld [vmem:[%s540 + $0x72] sm:$0xff]
      %v1307 = vpack.c.bf16 %v1300, %v1299
      %v1308 = vpack.c.bf16 %v1302, %v1301
      %v1309 = vpack.c.bf16 %v1304, %v1303
      %v1310 = vpack.c.bf16 %v1306, %v1305
      %1315 = vrot.lane.b32.xlu0 %v1307, 80
      %v1316 = vpop.permute.xlu0 %1315
      %1317 = vrot.lane.b32.xlu0 %v1308, 80
      %v1318 = vpop.permute.xlu0 %1317
      %1319 = vrot.lane.b32.xlu0 %v1309, 80
      %v1320 = vpop.permute.xlu0 %1319
      %1321 = vrot.lane.b32.xlu0 %v1310, 80
      %v1322 = vpop.permute.xlu0 %1321
      %1327 = vst.msk [vmem:[#allocation3] sm:$0xff] %vm725, %v1316
      %1328 = vst.msk [vmem:[#allocation3 + $0x10] sm:$0xff] %vm725, %v1318
      %1329 = vst.msk [vmem:[#allocation3 + $0x20] sm:$0xff] %vm725, %v1320
      %1330 = vst.msk [vmem:[#allocation3 + $0x30] sm:$0xff] %vm725, %v1322
      %v1331 = vld [vmem:[%s730] sm:$0xff]
      %v1332 = vld [vmem:[%s730 + $0x10] sm:$0xff]
      %v1333 = vld [vmem:[%s730 + $0x20] sm:$0xff]
      %v1334 = vld [vmem:[%s730 + $0x30] sm:$0xff]
      %v1335 = vld [vmem:[%s730 + $0x40] sm:$0xff]
      %v1336 = vld [vmem:[%s730 + $0x50] sm:$0xff]
      %v1337 = vld [vmem:[%s730 + $0x60] sm:$0xff]
      %v1338 = vld [vmem:[%s730 + $0x70] sm:$0xff]
      %v1339 = vpack.c.bf16 %v1332, %v1331
      %v1340 = vpack.c.bf16 %v1334, %v1333
      %v1341 = vpack.c.bf16 %v1336, %v1335
      %v1342 = vpack.c.bf16 %v1338, %v1337
      %1347 = vrot.lane.b32.xlu0 %v1339, 96
      %v1348 = vpop.permute.xlu0 %1347
      %1349 = vrot.lane.b32.xlu0 %v1340, 96
      %v1350 = vpop.permute.xlu0 %1349
      %1351 = vrot.lane.b32.xlu0 %v1341, 96
      %v1352 = vpop.permute.xlu0 %1351
      %1353 = vrot.lane.b32.xlu0 %v1342, 96
      %v1354 = vpop.permute.xlu0 %1353
      %1359 = vst.msk [vmem:[#allocation3] sm:$0xff] %vm759, %v1348
      %1360 = vst.msk [vmem:[#allocation3 + $0x10] sm:$0xff] %vm759, %v1350
      %1361 = vst.msk [vmem:[#allocation3 + $0x20] sm:$0xff] %vm759, %v1352
      %1362 = vst.msk [vmem:[#allocation3 + $0x30] sm:$0xff] %vm759, %v1354
      %v1363 = vld [vmem:[%s730 + $0x1] sm:$0xff]
      %v1364 = vld [vmem:[%s730 + $0x11] sm:$0xff]
      %v1365 = vld [vmem:[%s730 + $0x21] sm:$0xff]
      %v1366 = vld [vmem:[%s730 + $0x31] sm:$0xff]
      %v1367 = vld [vmem:[%s730 + $0x41] sm:$0xff]
      %v1368 = vld [vmem:[%s730 + $0x51] sm:$0xff]
      %v1369 = vld [vmem:[%s730 + $0x61] sm:$0xff]
      %v1370 = vld [vmem:[%s730 + $0x71] sm:$0xff]
      %v1371 = vpack.c.bf16 %v1364, %v1363
      %v1372 = vpack.c.bf16 %v1366, %v1365
      %v1373 = vpack.c.bf16 %v1368, %v1367
      %v1374 = vpack.c.bf16 %v1370, %v1369
      %1379 = vrot.lane.b32.xlu0 %v1371, 112
      %v1380 = vpop.permute.xlu0 %1379
      %1381 = vrot.lane.b32.xlu0 %v1372, 112
      %v1382 = vpop.permute.xlu0 %1381
      %1383 = vrot.lane.b32.xlu0 %v1373, 112
      %v1384 = vpop.permute.xlu0 %1383
      %1385 = vrot.lane.b32.xlu0 %v1374, 112
      %v1386 = vpop.permute.xlu0 %1385
      %1391 = vst.msk [vmem:[#allocation3] sm:$0xff] %vm792, %v1380
      %1392 = vst.msk [vmem:[#allocation3 + $0x10] sm:$0xff] %vm792, %v1382
      %1393 = vst.msk [vmem:[#allocation3 + $0x20] sm:$0xff] %vm792, %v1384
      %1394 = vst.msk [vmem:[#allocation3 + $0x30] sm:$0xff] %vm792, %v1386
      %v1395 = vld [vmem:[%s730 + $0x2] sm:$0xff]
      %v1396 = vld [vmem:[%s730 + $0x12] sm:$0xff]
      %v1397 = vld [vmem:[%s730 + $0x22] sm:$0xff]
      %v1398 = vld [vmem:[%s730 + $0x32] sm:$0xff]
      %v1399 = vld [vmem:[%s730 + $0x42] sm:$0xff]
      %v1400 = vld [vmem:[%s730 + $0x52] sm:$0xff]
      %v1401 = vld [vmem:[%s730 + $0x62] sm:$0xff]
      %v1402 = vld [vmem:[%s730 + $0x72] sm:$0xff]
      %v1403 = vpack.c.bf16 %v1396, %v1395
      %v1404 = vpack.c.bf16 %v1398, %v1397
      %v1405 = vpack.c.bf16 %v1400, %v1399
      %v1406 = vpack.c.bf16 %v1402, %v1401
      %1407 = vst.msk [vmem:[#allocation3 + $0x8] sm:$0xff] %vm342, %v1403
      %1408 = vst.msk [vmem:[#allocation3 + $0x18] sm:$0xff] %vm342, %v1404
      %1409 = vst.msk [vmem:[#allocation3 + $0x28] sm:$0xff] %vm342, %v1405
      %1410 = vst.msk [vmem:[#allocation3 + $0x38] sm:$0xff] %vm342, %v1406
      %v1411 = vld [vmem:[#allocation3] sm:$0xff]
      %v1412 = vld [vmem:[#allocation3 + $0x8] sm:$0xff]
      %v1413 = vld [vmem:[#allocation3 + $0x10] sm:$0xff]
      %v1414 = vld [vmem:[#allocation3 + $0x18] sm:$0xff]
      %v1415 = vld [vmem:[#allocation3 + $0x20] sm:$0xff]
      %v1416 = vld [vmem:[#allocation3 + $0x28] sm:$0xff]
      %v1417 = vld [vmem:[#allocation3 + $0x30] sm:$0xff]
      %v1418 = vld [vmem:[#allocation3 + $0x38] sm:$0xff]
      %v1419 = vld [vmem:[%s5] sm:$0xf]
      %v1420 = vld [vmem:[%s5 + $0x4] sm:$0xf]
      %v1421 = vld [vmem:[%s5 + $0x8] sm:$0xf]
      %v1422 = vld [vmem:[%s5 + $0xc] sm:$0xf]
      %v1423 = vld [vmem:[%s5 + $0x10] sm:$0xf]
      %v1424 = vld [vmem:[%s5 + $0x14] sm:$0xf]
      %v1425 = vld [vmem:[%s5 + $0x18] sm:$0xf]
      %v1426 = vld [vmem:[%s5 + $0x1c] sm:$0xf]
      %v1427 = vld [vmem:[%s5 + $0x20] sm:$0xf]
      %v1428 = vld [vmem:[%s5 + $0x24] sm:$0xf]
      %v1429 = vld [vmem:[%s5 + $0x28] sm:$0xf]
      %v1430 = vld [vmem:[%s5 + $0x2c] sm:$0xf]
      %v1431 = vld [vmem:[%s5 + $0x30] sm:$0xf]
      %v1432 = vld [vmem:[%s5 + $0x34] sm:$0xf]
      %v1433 = vld [vmem:[%s5 + $0x38] sm:$0xf]
      %v1434 = vld [vmem:[%s5 + $0x3c] sm:$0xf]
      %v1435 = vld [vmem:[%s5 + $0x40] sm:$0xf]
      %v1436 = vld [vmem:[%s5 + $0x44] sm:$0xf]
      %v1437 = vld [vmem:[%s6] sm:$0x1]
      %v1439 = vlaneseq
      %v1440 = vshrl.u32 %v1439, 7
      %v1441 = vsub.s32 0, %v1440
      %v1442 = vrot.slane %v1437, %v1441
      %v1462 = vunpack.c.l.b16 %v1419
      %v1463 = vunpack.c.l.b16 %v1420
      %v1464 = vunpack.c.l.b16 %v1421
      %v1465 = vunpack.c.l.b16 %v1422
      %v1466 = vunpack.c.l.b16 %v1423
      %v1467 = vunpack.c.l.b16 %v1424
      %v1468 = vunpack.c.l.b16 %v1425
      %v1469 = vunpack.c.l.b16 %v1426
      %v1470 = vunpack.c.l.b16 %v1427
      %v1471 = vunpack.c.l.b16 %v1428
      %v1472 = vunpack.c.l.b16 %v1429
      %v1473 = vunpack.c.l.b16 %v1430
      %v1474 = vunpack.c.l.b16 %v1431
      %v1475 = vunpack.c.l.b16 %v1432
      %v1476 = vunpack.c.l.b16 %v1433
      %v1477 = vunpack.c.l.b16 %v1434
      %v1478 = vunpack.c.l.b16 %v1435
      %v1479 = vunpack.c.l.b16 %v1436
      %v1480 = vpack.c.b16 %v1463, %v1462
      %v1481 = vpack.c.b16 %v1465, %v1464
      %v1482 = vpack.c.b16 %v1467, %v1466
      %v1483 = vpack.c.b16 %v1469, %v1468
      %v1484 = vpack.c.b16 %v1471, %v1470
      %v1485 = vpack.c.b16 %v1473, %v1472
      %v1486 = vpack.c.b16 %v1475, %v1474
      %v1487 = vpack.c.b16 %v1477, %v1476
      %v1488 = vpack.c.b16 %v1479, %v1478
      %v1499 = vsel %vm342, %v1412, 0
      %v1502 = vsel %vm342, %v1414, 0
      %v1505 = vsel %vm342, %v1416, 0
      %v1508 = vsel %vm342, %v1418, 0
      %1510 = vmatprep.subr.bf16.mxu0 0
      %1511 = vmatpush1.bf16.msra.mxu0 %v1480
      %1512 = vmatprep.subr.bf16.mxu0 0
      %1513 = vmatpush1.bf16.msra.mxu0 %v1481
      %1514 = vmatprep.subr.bf16.mxu0 0
      %1515 = vmatpush1.bf16.msra.mxu0 %v1482
      %1516 = vmatprep.subr.bf16.mxu0 0
      %1517 = vmatpush1.bf16.msra.mxu0 %v1483
      %1518 = vmatprep.subr.bf16.mxu0 0
      %1519 = vmatpush1.bf16.msra.mxu0 %v1484
      %1520 = vmatprep.subr.bf16.mxu0 0
      %1521 = vmatpush1.bf16.msra.mxu0 %v1485
      %1522 = vmatprep.subr.bf16.mxu0 0
      %1523 = vmatpush1.bf16.msra.mxu0 %v1486
      %1524 = vmatprep.subr.bf16.mxu0 0
      %1525 = vmatpush1.bf16.msra.mxu0 %v1487
      %1526 = vmatprep.subr.bf16.mxu0 0
      %1527 = vmatpush1.bf16.msra.mxu0 %v1488
      %1528 = vmatprep.subr.bf16.mxu0 0
      %1529 = vmatpush1.bf16.msra.mxu0 0
      %1530 = vmatprep.subr.bf16.mxu0 0
      %1531 = vmatpush1.bf16.msra.mxu0 0
      %1532 = vmatprep.subr.bf16.mxu0 0
      %1533 = vmatpush1.bf16.msra.mxu0 0
      %1534 = vmatprep.subr.bf16.mxu0 0
      %1535 = vmatpush1.bf16.msra.mxu0 0
      %1536 = vmatprep.subr.bf16.mxu0 0
      %1537 = vmatpush1.bf16.msra.mxu0 0
      %1538 = vmatprep.subr.bf16.mxu0 0
      %1539 = vmatpush1.bf16.msra.mxu0 0
      %1540 = vmatprep.subr.bf16.mxu0 0
      %1541 = vmatpush1.bf16.msra.mxu0 0
      %1542 = vmatprep.mubr.bf16.mxu0 %v1499
      %1543 = vmatmul.mubr.bf16.gmra.mrb[0].mxu0 %v1411
      %v1544 = vpop.f32.mrb[0].mxu0
      %v1545 = vadd.f32 %v1442, %v1544
      %v1546 = vpop.f32.mrb[0].mxu0
      %v1547 = vpop.f32.mrb[0].mxu0
      %v1548 = vadd.f32 %v1442, %v1547
      %v1549 = vpop.f32.mrb[0].mxu0
      %1550 = vmatprep.mubr.bf16.mxu0 %v1502
      %1551 = vmatmul.mubr.bf16.gmra.mrb[0].mxu0 %v1413
      %v1552 = vpop.f32.mrb[0].mxu0
      %v1553 = vadd.f32 %v1442, %v1552
      %v1554 = vpop.f32.mrb[0].mxu0
      %v1555 = vpop.f32.mrb[0].mxu0
      %v1556 = vadd.f32 %v1442, %v1555
      %v1557 = vpop.f32.mrb[0].mxu0
      %1558 = vmatprep.mubr.bf16.mxu0 %v1505
      %1559 = vmatmul.mubr.bf16.gmra.mrb[0].mxu0 %v1415
      %v1560 = vpop.f32.mrb[0].mxu0
      %v1561 = vadd.f32 %v1442, %v1560
      %v1562 = vpop.f32.mrb[0].mxu0
      %v1563 = vpop.f32.mrb[0].mxu0
      %v1564 = vadd.f32 %v1442, %v1563
      %v1565 = vpop.f32.mrb[0].mxu0
      %1566 = vmatprep.mubr.bf16.mxu0 %v1508
      %1567 = vmatmul.mubr.bf16.gmra.mrb[0].mxu0 %v1417
      %v1568 = vpop.f32.mrb[0].mxu0
      %v1569 = vadd.f32 %v1442, %v1568
      %v1570 = vpop.f32.mrb[0].mxu0
      %v1571 = vpop.f32.mrb[0].mxu0
      %v1572 = vadd.f32 %v1442, %v1571
      %v1573 = vpop.f32.mrb[0].mxu0
      %1574 = vdwg.mxu0
      %v1575 = vadd.f32 %v1545, %v334
      %v1576 = vadd.f32 %v1548, %v335
      %v1577 = vadd.f32 %v1553, %v336
      %v1578 = vadd.f32 %v1556, %v337
      %v1579 = vadd.f32 %v1561, %v338
      %v1580 = vadd.f32 %v1564, %v339
      %v1581 = vadd.f32 %v1569, %v340
      %v1582 = vadd.f32 %v1572, %v341
      %1583 = vst.msk [vmem:[%s332] sm:$0xff] %vm342, %v1575
      %1584 = vst.msk [vmem:[%s332 + $0x8] sm:$0xff] %vm342, %v1576
      %1585 = vst.msk [vmem:[%s332 + $0x10] sm:$0xff] %vm342, %v1577
      %1586 = vst.msk [vmem:[%s332 + $0x18] sm:$0xff] %vm342, %v1578
      %1587 = vst.msk [vmem:[%s332 + $0x20] sm:$0xff] %vm342, %v1579
      %1588 = vst.msk [vmem:[%s332 + $0x28] sm:$0xff] %vm342, %v1580
      %1589 = vst.msk [vmem:[%s332 + $0x30] sm:$0xff] %vm342, %v1581
      %1590 = vst.msk [vmem:[%s332 + $0x38] sm:$0xff] %vm342, %v1582
      %p1591 = scmp.lt.s32.totalorder %s20, 1
      %s1592 = scalar_select %p1591, %s20, 1
      %s1593 = smul.addr %s1592, 8
      %s1594 = smul.addr %s1593, 8
      %s1595 = scalar_lea.vmem %s9, %s1594
      // Predicated region
      $region57: #{tpu_custom_call.1} parent=55 // pred_check
        %p1596 = pneg %p232
      $region58: #{tpu_custom_call.1} parent=55 // pred_check_branch
        %1598 = sbr.rel (%p1596) target = $region60
      $region59: #{tpu_custom_call.1} parent=55 // pred_region
        _
      $region60: #{tpu_custom_call.1} parent=55 // pred_fallthru
        _
    $region56: #{tpu_custom_call.1} parent=5 // pred_fallthru
      _
    %p1599 = scmp.le.s32.totalorder 2, %s15
    // Predicated region
    $region61: #{tpu_custom_call.1} parent=5 // pred_check
      %p1600 = pneg %p1599
    $region62: #{tpu_custom_call.1} parent=5 // pred_check_branch
      %1602 = sbr.rel (%p1600) target = $region64
    $region63: #{tpu_custom_call.1} parent=5 // pred_region
      %s1603 = ssub.s32 %s15, 2
      // Predicated region
      $region65: #{tpu_custom_call.1} parent=63 // pred_check
        %p1604 = pneg %p238
      $region66: #{tpu_custom_call.1} parent=63 // pred_check_branch
        %1606 = sbr.rel (%p1604) target = $region68
      $region67: #{tpu_custom_call.1} parent=63 // pred_region
        %p1607 = scmp.lt.s32.totalorder %s21, 1
        %s1608 = scalar_select %p1607, %s21, 1
        %s1609 = smul.addr %s1608, 8
        %s1610 = smul.addr %s1609, 8
        %s1611 = scalar_lea.vmem %s9, %s1610
      $region68: #{tpu_custom_call.1} parent=63 // pred_fallthru
        _
    $region64: #{tpu_custom_call.1} parent=5 // pred_fallthru
      _
  $region6: #{tpu_custom_call.1} parent=0 // loop_footer
    %s19 = sadd.s32 1, %s15
  $region7: #{tpu_custom_call.1} parent=0 // loop_footer_branch
    %14 = sbr.rel target = $region3
  $region8: #{tpu_custom_call.1} parent=0 // loop_exit
    _

</llo_original>
